<compile_context>
chip_gen: v5e
topology: v5e:2x2
jax: 0.10.0
libtpu: 0.0.40
codegen_flags: <defaults>
</compile_context>

<pallas_src>
import functools

import jax
import jax.numpy as jnp
from jax.experimental import pallas as pl
from jax.experimental.pallas import tpu as pltpu

LANE = 128
SUBLANE = 8
VMEM_LIMIT = 32 * 1024 * 1024


def _round_up(n, m):
    return ((n + m - 1) // m) * m


# ---------------------------------------------------------------------------
# Geometry for Conv2d(k=3, stride=2, pad=1) evaluated via 2x2 phase grids
# ---------------------------------------------------------------------------
def _conv_geom(h, w):
    h_out = (h + 2 - 3) // 2 + 1
    w_out = (w + 2 - 3) // 2 + 1
    hp = _round_up(h + 2, 2)              # pad=1 each side, then pad to even
    wp = _round_up(w + 2, 2)
    ph_h, ph_w = hp // 2, wp // 2         # per-phase grid dims (ph_h = h_out + 1)
    n_acc = h_out * ph_w                  # flat accumulator rows; cols >= w_out are garbage
    r_in = _round_up(ph_h * ph_w + 1, SUBLANE)   # rows/phase >= max tap offset + n_acc
    return dict(h_out=h_out, w_out=w_out, ph_h=ph_h, ph_w=ph_w,
                n_acc=n_acc, r_in=r_in)


def _phase_split(x_nhwc, geom, c_in_pad):
    """(B, H, W, C) -> (B, 4*r_in, c_in_pad) bf16: pad=1, 2x2 space-to-depth, flatten.

    Row  p*r_in + a*ph_w + b  holds  x_pad[2a + p//2, 2b + p%2, :]  so every conv
    tap (kh, kw) is a contiguous row window of one phase grid (a pure 1x relayout,
    no im2col duplication).
    """
    B, H, W, C = x_nhwc.shape
    ph_h, ph_w, r_in = geom["ph_h"], geom["ph_w"], geom["r_in"]
    xp = jnp.pad(x_nhwc, ((0, 0),
                          (1, 2 * ph_h - H - 1),
                          (1, 2 * ph_w - W - 1),
                          (0, c_in_pad - C)))
    xp = xp.reshape(B, ph_h, 2, ph_w, 2, c_in_pad).transpose(0, 2, 4, 1, 3, 5)
    xp = xp.reshape(B, 4, ph_h * ph_w, c_in_pad)
    xp = jnp.pad(xp, ((0, 0), (0, 0), (0, r_in - ph_h * ph_w), (0, 0)))
    return xp.reshape(B, 4 * r_in, c_in_pad).astype(jnp.bfloat16)


# ---------------------------------------------------------------------------
# Fused Conv2d(3, s=2, p=1, no bias) + InstanceNorm2d(affine) + ReLU kernel
# ---------------------------------------------------------------------------
def _conv_in_relu_kernel(x_ref, w_ref, g_ref, b_ref, out_ref, *,
                         tap_starts, n_acc, ph_w, w_out, inv_count):
    """One sample (grid over batch).

    x_ref : (1, 4*r_in, Cin_p) bf16  phase-split activations
    w_ref : (9, Cin_p, Cpad)   bf16  per-tap (Cin, Cout) weight matrices (resident)
    g_ref, b_ref : (1, Cpad)   f32   InstanceNorm gamma / beta
    out_ref: (1, n_acc, Cpad)  bf16  flat (h_out, ph_w) rows; cols >= w_out are garbage
    """
    # In-kernel im2col: 9 shifted row-window matmuls accumulated in f32.
    acc = jnp.dot(x_ref[0, pl.ds(tap_starts[0], n_acc), :], w_ref[0],
                  preferred_element_type=jnp.float32)
    for t in range(1, 9):
        acc = acc + jnp.dot(x_ref[0, pl.ds(tap_starts[t], n_acc), :], w_ref[t],
                            preferred_element_type=jnp.float32)

    # Masked single-pass InstanceNorm statistics over the valid spatial positions;
    # the cross-sublane reductions ride the MXU via a (1, n_acc) mask-row dot (f32).
    col = jax.lax.broadcasted_iota(jnp.int32, (1, n_acc), 1)
    mrow = ((col % ph_w) < w_out).astype(jnp.float32)
    mean = jnp.dot(mrow, acc, preferred_element_type=jnp.float32) * inv_count
    ex2 = jnp.dot(mrow, acc * acc, preferred_element_type=jnp.float32) * inv_count
    var = jnp.maximum(ex2 - mean * mean, 0.0)

    # Fused affine: relu(y * scale + shift).  Padded channels have gamma=beta=0
    # and zero weights, so they stay exactly zero.
    scale = g_ref[...] * jax.lax.rsqrt(var + 1e-5)
    shift = b_ref[...] - mean * scale
    out_ref[0] = jnp.maximum(acc * scale + shift, 0.0).astype(out_ref.dtype)


def conv_in_relu_block(x_nhwc, blk):
    """One `_block`: Conv2d(3, s=2, p=1, no bias) + InstanceNorm2d(affine) + ReLU.

    Input  (B, H, W, C) channels-last -> output (B, H_out, W_out, C_out) channels-last.
    """
    B = x_nhwc.shape[0]
    g = blk["geom"]
    c_in_pad = blk["c_in_pad"]
    c_pad = blk["w"].shape[-1]
    xph = _phase_split(x_nhwc, g, c_in_pad)

    out = pl.pallas_call(
        functools.partial(
            _conv_in_relu_kernel,
            tap_starts=blk["tap_starts"], n_acc=g["n_acc"], ph_w=g["ph_w"],
            w_out=g["w_out"], inv_count=1.0 / float(g["h_out"] * g["w_out"])),
        out_shape=jax.ShapeDtypeStruct((B, g["n_acc"], c_pad), jnp.bfloat16),
        grid=(B,),
        in_specs=[
            pl.BlockSpec((1, 4 * g["r_in"], c_in_pad), lambda b: (b, 0, 0)),
            pl.BlockSpec((9, c_in_pad, c_pad), lambda b: (0, 0, 0)),   # resident weights
            pl.BlockSpec((1, c_pad), lambda b: (0, 0)),                # resident gamma
            pl.BlockSpec((1, c_pad), lambda b: (0, 0)),                # resident beta
        ],
        out_specs=pl.BlockSpec((1, g["n_acc"], c_pad), lambda b: (b, 0, 0)),
        compiler_params=pltpu.CompilerParams(
            dimension_semantics=("parallel",),      # megacore sharding on v7x
            vmem_limit_bytes=VMEM_LIMIT),
    )(xph, blk["w"], blk["gamma"], blk["beta"])

    # Strip garbage columns and channel padding (cheap 1x slice on the host side).
    out = out.reshape(B, g["h_out"], g["ph_w"], c_pad)
    return out[:, :, :g["w_out"], :blk["c_out"]]


# ---------------------------------------------------------------------------
# MLP heads (Flatten -> Linear -> Linear [-> Sigmoid]); batch folded into M
# ---------------------------------------------------------------------------
def _cls_head_kernel(x_ref, w1_ref, b1_ref, w2_ref, b2_ref, out_ref):
    h = jnp.dot(x_ref[...], w1_ref[...], preferred_element_type=jnp.float32) + b1_ref[...]
    out_ref[...] = jnp.dot(h.astype(jnp.bfloat16), w2_ref[...],
                           preferred_element_type=jnp.float32) + b2_ref[...]


def _both_heads_kernel(x_ref, w1c_ref, b1c_ref, w2c_ref, b2c_ref,
                       w1d_ref, b1d_ref, w2d_ref, b2d_ref, cls_ref, dsc_ref):
    x = x_ref[...]                       # x_flat loaded once, reused by both heads
    hc = jnp.dot(x, w1c_ref[...], preferred_element_type=jnp.float32) + b1c_ref[...]
    cls_ref[...] = jnp.dot(hc.astype(jnp.bfloat16), w2c_ref[...],
                           preferred_element_type=jnp.float32) + b2c_ref[...]
    hd = jnp.dot(x, w1d_ref[...], preferred_element_type=jnp.float32) + b1d_ref[...]
    yd = jnp.dot(hd.astype(jnp.bfloat16), w2d_ref[...],
                 preferred_element_type=jnp.float32) + b2d_ref[...]
    dsc_ref[...] = pl.reciprocal(1.0 + jnp.exp(-yd), approx=True)   # sigmoid on the EUP


_VMEM_SPEC = pl.BlockSpec(memory_space=pltpu.MemorySpace.VMEM)


def _cls_head_call(x_flat, hc):
    # Batch stays folded into the matmul M dimension (per-sample grid would give
    # M=1 matmuls); everything fits whole-array in VMEM at this scale.
    B = x_flat.shape[0]
    return pl.pallas_call(
        _cls_head_kernel,
        out_shape=jax.ShapeDtypeStruct((B, hc["w2"].shape[1]), jnp.float32),
        in_specs=[_VMEM_SPEC] * 5,
        out_specs=_VMEM_SPEC,
        compiler_params=pltpu.CompilerParams(vmem_limit_bytes=VMEM_LIMIT),
    )(x_flat, hc["w1"], hc["b1"], hc["w2"], hc["b2"])


def _both_heads_call(x_flat, hc, hd):
    B = x_flat.shape[0]
    return pl.pallas_call(
        _both_heads_kernel,
        out_shape=(jax.ShapeDtypeStruct((B, hc["w2"].shape[1]), jnp.float32),
                   jax.ShapeDtypeStruct((B, hd["w2"].shape[1]), jnp.float32)),
        in_specs=[_VMEM_SPEC] * 9,
        out_specs=(_VMEM_SPEC, _VMEM_SPEC),
        compiler_params=pltpu.CompilerParams(vmem_limit_bytes=VMEM_LIMIT),
    )(x_flat, hc["w1"], hc["b1"], hc["w2"], hc["b2"],
      hd["w1"], hd["b1"], hd["w2"], hd["b2"])


# ---------------------------------------------------------------------------
# Parameters: PyTorch-layout init + one-time relayout/pad/cast for the kernels
# ---------------------------------------------------------------------------
def init_params(key, in_channels, out_classes, layers_shape, input_dim):
    """PyTorch-layout params (Conv2d OIHW weights, Linear (out, in) weights)."""
    params = {"blocks": []}
    c_in = in_channels
    h, w = input_dim[1], input_dim[2]
    for l_size in layers_shape:
        key, k_w = jax.random.split(key)
        conv_w = jax.random.normal(k_w, (l_size, c_in, 3, 3), jnp.float32) * 0.1
        gamma = jnp.ones((l_size,), jnp.float32)   # InstanceNorm2d(affine) default init
        beta = jnp.zeros((l_size,), jnp.float32)
        params["blocks"].append((conv_w, gamma, beta))
        c_in = l_size
        h = (h + 2 - 3) // 2 + 1
        w = (w + 2 - 3) // 2 + 1
    num_features = c_in * h * w

    key, k1, k2, k3, k4 = jax.random.split(key, 5)
    params["classifier"] = (
        jax.random.normal(k1, (128, num_features), jnp.float32) * 0.05,
        jnp.zeros((128,), jnp.float32),
        jax.random.normal(k2, (out_classes, 128), jnp.float32) * 0.05,
        jnp.zeros((out_classes,), jnp.float32),
    )
    params["discriminator"] = (
        jax.random.normal(k3, (128, num_features), jnp.float32) * 0.05,
        jnp.zeros((128,), jnp.float32),
        jax.random.normal(k4, (1, 128), jnp.float32) * 0.05,
        jnp.zeros((1,), jnp.float32),
    )
    return params


def prepare_params(raw, in_channels, layers_shape, input_dim):
    """One-time relayout / padding / bf16 cast (hoisted out of forward)."""
    del layers_shape  # shapes come from the raw params themselves
    blocks = []
    c_in = in_channels
    h, w = input_dim[1], input_dim[2]
    for conv_w, gamma, beta in raw["blocks"]:
        c_out = conv_w.shape[0]
        g = _conv_geom(h, w)
        c_in_pad = _round_up(c_in, SUBLANE)
        c_pad = _round_up(c_out, LANE)
        # (C_out, C_in, 3, 3) -> (9, Cin_p, Cpad), tap order t = kh*3 + kw.
        w_t = jnp.transpose(conv_w, (2, 3, 1, 0)).reshape(9, c_in, c_out)
        w_t = jnp.pad(w_t, ((0, 0), (0, c_in_pad - c_in), (0, c_pad - c_out)))
        tap_starts = tuple(
            ((kh % 2) * 2 + (kw % 2)) * g["r_in"] + (kh // 2) * g["ph_w"] + (kw // 2)
            for kh in range(3) for kw in range(3))
        blocks.append({
            "w": w_t.astype(jnp.bfloat16),
            "gamma": jnp.pad(gamma, (0, c_pad - c_out)).reshape(1, c_pad).astype(jnp.float32),
            "beta": jnp.pad(beta, (0, c_pad - c_out)).reshape(1, c_pad).astype(jnp.float32),
            "geom": g,
            "c_in_pad": c_in_pad,
            "c_out": c_out,
            "tap_starts": tap_starts,
        })
        c_in = c_out
        h, w = g["h_out"], g["w_out"]

    def prep_head(w1, b1, w2, b2):
        hidden = w1.shape[0]
        n_out = w2.shape[0]
        out_pad = _round_up(n_out, LANE)
        # Channel padding is stripped before Flatten, so W1 keeps only the real
        # num_features rows; permute them from NCHW flatten (c,h,w) to the
        # kernel's NHWC flatten (h,w,c).
        w1_r = (w1.T.reshape(c_in, h, w, hidden)
                .transpose(1, 2, 0, 3).reshape(c_in * h * w, hidden))
        return {
            "w1": w1_r.astype(jnp.bfloat16),
            "b1": b1.reshape(1, hidden).astype(jnp.float32),
            "w2": jnp.pad(w2.T, ((0, 0), (0, out_pad - n_out))).astype(jnp.bfloat16),
            "b2": jnp.pad(b2, (0, out_pad - n_out)).reshape(1, out_pad).astype(jnp.float32),
        }

    prep = {"blocks": blocks,
            "cls": prep_head(*raw["classifier"]),
            "dsc": prep_head(*raw["discriminator"])}
    meta = {"n_cls": raw["classifier"][2].shape[0]}
    return prep, meta


# ---------------------------------------------------------------------------
# Forward pass (mirrors CNNParameterised.forward)
# ---------------------------------------------------------------------------
def build_forward(prep, meta):
    n_cls = meta["n_cls"]

    @functools.partial(jax.jit, static_argnames=("discriminator",))
    def forward(x, discriminator=False):
        if x.ndim < 4:
            x = x[:, None, :, :]
        x = jnp.transpose(x, (0, 2, 3, 1))          # NCHW -> NHWC once, then stay NHWC
        for blk in prep["blocks"]:
            x = conv_in_relu_block(x, blk)
        # NHWC flatten; the heads' W1 rows were permuted to match at prep time.
        x_flat = x.reshape(x.shape[0], -1).astype(jnp.bfloat16)
        if discriminator:
            cls, dsc = _both_heads_call(x_flat, prep["cls"], prep["dsc"])
            return cls[:, :n_cls], dsc[:, :1]
        return _cls_head_call(x_flat, prep["cls"])[:, :n_cls]

    return forward


# ---------------------------------------------------------------------------
# Pure-JAX f32 reference (for correctness sanity check)
# ---------------------------------------------------------------------------
def reference_forward(x, raw, discriminator=False):
    if x.ndim < 4:
        x = x[:, None, :, :]
    for conv_w, gamma, beta in raw["blocks"]:
        x = jax.lax.conv_general_dilated(x, conv_w, (2, 2), ((1, 1), (1, 1)),
                                         dimension_numbers=("NCHW", "OIHW", "NCHW"))
        mean = x.mean(axis=(2, 3), keepdims=True)
        var = x.var(axis=(2, 3), keepdims=True)
        x = (x - mean) * jax.lax.rsqrt(var + 1e-5)
        x = x * gamma[None, :, None, None] + beta[None, :, None, None]
        x = jnp.maximum(x, 0.0)
    xf = x.reshape(x.shape[0], -1)
    w1, b1, w2, b2 = raw["classifier"]
    cls = (xf @ w1.T + b1) @ w2.T + b2
    if discriminator:
        w1d, b1d, w2d, b2d = raw["discriminator"]
        dsc = jax.nn.sigmoid((xf @ w1d.T + b1d) @ w2d.T + b2d)
        return cls, dsc
    return cls


if __name__ == "__main__":
    key = jax.random.PRNGKey(0)
    in_channels = 4
    out_classes = 10
    layers_shape = [8, 16]
    input_dim = (4, 16, 16)
    batch = 2

    key, k_x, k_p = jax.random.split(key, 3)
    x = jax.random.normal(k_x, (batch,) + input_dim, jnp.float32)
    raw_params = init_params(k_p, in_channels, out_classes, layers_shape, input_dim)
    prep, meta = prepare_params(raw_params, in_channels, layers_shape, input_dim)
    forward = build_forward(prep, meta)

    logits = forward(x, discriminator=False)
    logits_d, disc_out = forward(x, discriminator=True)
    jax.block_until_ready((logits, logits_d, disc_out))

    assert logits.shape == (batch, out_classes)
    assert logits_d.shape == (batch, out_classes)
    assert disc_out.shape == (batch, 1)
    assert bool(jnp.all(jnp.isfinite(logits)))
    assert bool(jnp.all(jnp.isfinite(disc_out)))
    assert bool(jnp.all((disc_out >= 0.0) & (disc_out <= 1.0)))

    # Sanity check against the pure-JAX f32 reference (bf16-sized tolerance).
    ref_cls, ref_dsc = reference_forward(x, raw_params, discriminator=True)
    cls_err = float(jnp.max(jnp.abs(logits_d - ref_cls)))
    dsc_err = float(jnp.max(jnp.abs(disc_out - ref_dsc)))
    assert cls_err < 0.1, f"classifier mismatch vs reference: {cls_err}"
    assert dsc_err < 0.05, f"discriminator mismatch vs reference: {dsc_err}"

    print("KERNEL_OK")
</pallas_src>

<mosaic_0001>
module attributes {stable_mosaic.version = 11 : i64} {
  func.func @_conv_in_relu_kernel(%arg0: i32, %arg1: memref<1x352x8xbf16, #tpu.memory_space<vmem>>, %arg2: memref<9x8x128xbf16, #tpu.memory_space<vmem>>, %arg3: memref<1x128xf32, #tpu.memory_space<vmem>>, %arg4: memref<1x128xf32, #tpu.memory_space<vmem>>, %arg5: memref<1x72x128xbf16, #tpu.memory_space<vmem>>) attributes {dimension_semantics = [#tpu.dimension_semantics<parallel>], iteration_bounds = array<i64: 2>, scalar_prefetch = 0 : i64, scratch_operands = 0 : i64, tpu.core_type = #tpu.core_type<tc>, window_params = [{transform_indices = @transform_0, window_bounds = array<i64: 1, 352, 8>}, {pipeline_mode = #tpu.pipeline_mode<synchronous>, transform_indices = @transform_1, window_bounds = array<i64: 9, 8, 128>}, {pipeline_mode = #tpu.pipeline_mode<synchronous>, transform_indices = @transform_2, window_bounds = array<i64: 1, 128>}, {pipeline_mode = #tpu.pipeline_mode<synchronous>, transform_indices = @transform_3, window_bounds = array<i64: 1, 128>}, {transform_indices = @transform_4, window_bounds = array<i64: 1, 72, 128>}]} {
    %c0 = arith.constant 0 : index
    %c0_0 = arith.constant 0 : index
    %c0_1 = arith.constant 0 : index
    %0 = vector.load %arg1[%c0, %c0_0, %c0_1] : memref<1x352x8xbf16, #tpu.memory_space<vmem>>, vector<1x72x8xbf16>
    %1 = vector.shape_cast %0 : vector<1x72x8xbf16> to vector<72x8xbf16>
    %c0_2 = arith.constant 0 : index
    %c0_3 = arith.constant 0 : index
    %c0_4 = arith.constant 0 : index
    %2 = vector.load %arg2[%c0_2, %c0_3, %c0_4] : memref<9x8x128xbf16, #tpu.memory_space<vmem>>, vector<1x8x128xbf16>
    %3 = vector.shape_cast %2 : vector<1x8x128xbf16> to vector<8x128xbf16>
    %cst = arith.constant dense<0.000000e+00> : vector<72x128xf32>
    %4 = tpu.matmul %1, %3, %cst {dimension_numbers = #tpu.dot_dimension_numbers<[1], [0], [0], [1], [0, 0, 1, 1], [], []>} : vector<72x8xbf16>, vector<8x128xbf16>, vector<72x128xf32> -> vector<72x128xf32>
    %c0_5 = arith.constant 0 : index
    %c88 = arith.constant 88 : index
    %c0_6 = arith.constant 0 : index
    %5 = vector.load %arg1[%c0_5, %c88, %c0_6] : memref<1x352x8xbf16, #tpu.memory_space<vmem>>, vector<1x72x8xbf16>
    %6 = vector.shape_cast %5 : vector<1x72x8xbf16> to vector<72x8xbf16>
    %c1 = arith.constant 1 : index
    %c0_7 = arith.constant 0 : index
    %c0_8 = arith.constant 0 : index
    %7 = vector.load %arg2[%c1, %c0_7, %c0_8] : memref<9x8x128xbf16, #tpu.memory_space<vmem>>, vector<1x8x128xbf16>
    %8 = vector.shape_cast %7 : vector<1x8x128xbf16> to vector<8x128xbf16>
    %cst_9 = arith.constant dense<0.000000e+00> : vector<72x128xf32>
    %9 = tpu.matmul %6, %8, %cst_9 {dimension_numbers = #tpu.dot_dimension_numbers<[1], [0], [0], [1], [0, 0, 1, 1], [], []>} : vector<72x8xbf16>, vector<8x128xbf16>, vector<72x128xf32> -> vector<72x128xf32>
    %10 = arith.addf %4, %9 : vector<72x128xf32>
    %c0_10 = arith.constant 0 : index
    %c1_11 = arith.constant 1 : index
    %c0_12 = arith.constant 0 : index
    %11 = vector.load %arg1[%c0_10, %c1_11, %c0_12] : memref<1x352x8xbf16, #tpu.memory_space<vmem>>, vector<1x72x8xbf16>
    %12 = vector.shape_cast %11 : vector<1x72x8xbf16> to vector<72x8xbf16>
    %c2 = arith.constant 2 : index
    %c0_13 = arith.constant 0 : index
    %c0_14 = arith.constant 0 : index
    %13 = vector.load %arg2[%c2, %c0_13, %c0_14] : memref<9x8x128xbf16, #tpu.memory_space<vmem>>, vector<1x8x128xbf16>
    %14 = vector.shape_cast %13 : vector<1x8x128xbf16> to vector<8x128xbf16>
    %cst_15 = arith.constant dense<0.000000e+00> : vector<72x128xf32>
    %15 = tpu.matmul %12, %14, %cst_15 {dimension_numbers = #tpu.dot_dimension_numbers<[1], [0], [0], [1], [0, 0, 1, 1], [], []>} : vector<72x8xbf16>, vector<8x128xbf16>, vector<72x128xf32> -> vector<72x128xf32>
    %16 = arith.addf %10, %15 : vector<72x128xf32>
    %c0_16 = arith.constant 0 : index
    %c176 = arith.constant 176 : index
    %c0_17 = arith.constant 0 : index
    %17 = vector.load %arg1[%c0_16, %c176, %c0_17] : memref<1x352x8xbf16, #tpu.memory_space<vmem>>, vector<1x72x8xbf16>
    %18 = vector.shape_cast %17 : vector<1x72x8xbf16> to vector<72x8xbf16>
    %c3 = arith.constant 3 : index
    %c0_18 = arith.constant 0 : index
    %c0_19 = arith.constant 0 : index
    %19 = vector.load %arg2[%c3, %c0_18, %c0_19] : memref<9x8x128xbf16, #tpu.memory_space<vmem>>, vector<1x8x128xbf16>
    %20 = vector.shape_cast %19 : vector<1x8x128xbf16> to vector<8x128xbf16>
    %cst_20 = arith.constant dense<0.000000e+00> : vector<72x128xf32>
    %21 = tpu.matmul %18, %20, %cst_20 {dimension_numbers = #tpu.dot_dimension_numbers<[1], [0], [0], [1], [0, 0, 1, 1], [], []>} : vector<72x8xbf16>, vector<8x128xbf16>, vector<72x128xf32> -> vector<72x128xf32>
    %22 = arith.addf %16, %21 : vector<72x128xf32>
    %c0_21 = arith.constant 0 : index
    %c264 = arith.constant 264 : index
    %c0_22 = arith.constant 0 : index
    %23 = vector.load %arg1[%c0_21, %c264, %c0_22] : memref<1x352x8xbf16, #tpu.memory_space<vmem>>, vector<1x72x8xbf16>
    %24 = vector.shape_cast %23 : vector<1x72x8xbf16> to vector<72x8xbf16>
    %c4 = arith.constant 4 : index
    %c0_23 = arith.constant 0 : index
    %c0_24 = arith.constant 0 : index
    %25 = vector.load %arg2[%c4, %c0_23, %c0_24] : memref<9x8x128xbf16, #tpu.memory_space<vmem>>, vector<1x8x128xbf16>
    %26 = vector.shape_cast %25 : vector<1x8x128xbf16> to vector<8x128xbf16>
    %cst_25 = arith.constant dense<0.000000e+00> : vector<72x128xf32>
    %27 = tpu.matmul %24, %26, %cst_25 {dimension_numbers = #tpu.dot_dimension_numbers<[1], [0], [0], [1], [0, 0, 1, 1], [], []>} : vector<72x8xbf16>, vector<8x128xbf16>, vector<72x128xf32> -> vector<72x128xf32>
    %28 = arith.addf %22, %27 : vector<72x128xf32>
    %c0_26 = arith.constant 0 : index
    %c177 = arith.constant 177 : index
    %c0_27 = arith.constant 0 : index
    %29 = vector.load %arg1[%c0_26, %c177, %c0_27] : memref<1x352x8xbf16, #tpu.memory_space<vmem>>, vector<1x72x8xbf16>
    %30 = vector.shape_cast %29 : vector<1x72x8xbf16> to vector<72x8xbf16>
    %c5 = arith.constant 5 : index
    %c0_28 = arith.constant 0 : index
    %c0_29 = arith.constant 0 : index
    %31 = vector.load %arg2[%c5, %c0_28, %c0_29] : memref<9x8x128xbf16, #tpu.memory_space<vmem>>, vector<1x8x128xbf16>
    %32 = vector.shape_cast %31 : vector<1x8x128xbf16> to vector<8x128xbf16>
    %cst_30 = arith.constant dense<0.000000e+00> : vector<72x128xf32>
    %33 = tpu.matmul %30, %32, %cst_30 {dimension_numbers = #tpu.dot_dimension_numbers<[1], [0], [0], [1], [0, 0, 1, 1], [], []>} : vector<72x8xbf16>, vector<8x128xbf16>, vector<72x128xf32> -> vector<72x128xf32>
    %34 = arith.addf %28, %33 : vector<72x128xf32>
    %c0_31 = arith.constant 0 : index
    %c9 = arith.constant 9 : index
    %c0_32 = arith.constant 0 : index
    %35 = vector.load %arg1[%c0_31, %c9, %c0_32] : memref<1x352x8xbf16, #tpu.memory_space<vmem>>, vector<1x72x8xbf16>
    %36 = vector.shape_cast %35 : vector<1x72x8xbf16> to vector<72x8xbf16>
    %c6 = arith.constant 6 : index
    %c0_33 = arith.constant 0 : index
    %c0_34 = arith.constant 0 : index
    %37 = vector.load %arg2[%c6, %c0_33, %c0_34] : memref<9x8x128xbf16, #tpu.memory_space<vmem>>, vector<1x8x128xbf16>
    %38 = vector.shape_cast %37 : vector<1x8x128xbf16> to vector<8x128xbf16>
    %cst_35 = arith.constant dense<0.000000e+00> : vector<72x128xf32>
    %39 = tpu.matmul %36, %38, %cst_35 {dimension_numbers = #tpu.dot_dimension_numbers<[1], [0], [0], [1], [0, 0, 1, 1], [], []>} : vector<72x8xbf16>, vector<8x128xbf16>, vector<72x128xf32> -> vector<72x128xf32>
    %40 = arith.addf %34, %39 : vector<72x128xf32>
    %c0_36 = arith.constant 0 : index
    %c97 = arith.constant 97 : index
    %c0_37 = arith.constant 0 : index
    %41 = vector.load %arg1[%c0_36, %c97, %c0_37] : memref<1x352x8xbf16, #tpu.memory_space<vmem>>, vector<1x72x8xbf16>
    %42 = vector.shape_cast %41 : vector<1x72x8xbf16> to vector<72x8xbf16>
    %c7 = arith.constant 7 : index
    %c0_38 = arith.constant 0 : index
    %c0_39 = arith.constant 0 : index
    %43 = vector.load %arg2[%c7, %c0_38, %c0_39] : memref<9x8x128xbf16, #tpu.memory_space<vmem>>, vector<1x8x128xbf16>
    %44 = vector.shape_cast %43 : vector<1x8x128xbf16> to vector<8x128xbf16>
    %cst_40 = arith.constant dense<0.000000e+00> : vector<72x128xf32>
    %45 = tpu.matmul %42, %44, %cst_40 {dimension_numbers = #tpu.dot_dimension_numbers<[1], [0], [0], [1], [0, 0, 1, 1], [], []>} : vector<72x8xbf16>, vector<8x128xbf16>, vector<72x128xf32> -> vector<72x128xf32>
    %46 = arith.addf %40, %45 : vector<72x128xf32>
    %c0_41 = arith.constant 0 : index
    %c10 = arith.constant 10 : index
    %c0_42 = arith.constant 0 : index
    %47 = vector.load %arg1[%c0_41, %c10, %c0_42] : memref<1x352x8xbf16, #tpu.memory_space<vmem>>, vector<1x72x8xbf16>
    %48 = vector.shape_cast %47 : vector<1x72x8xbf16> to vector<72x8xbf16>
    %c8 = arith.constant 8 : index
    %c0_43 = arith.constant 0 : index
    %c0_44 = arith.constant 0 : index
    %49 = vector.load %arg2[%c8, %c0_43, %c0_44] : memref<9x8x128xbf16, #tpu.memory_space<vmem>>, vector<1x8x128xbf16>
    %50 = vector.shape_cast %49 : vector<1x8x128xbf16> to vector<8x128xbf16>
    %cst_45 = arith.constant dense<0.000000e+00> : vector<72x128xf32>
    %51 = tpu.matmul %48, %50, %cst_45 {dimension_numbers = #tpu.dot_dimension_numbers<[1], [0], [0], [1], [0, 0, 1, 1], [], []>} : vector<72x8xbf16>, vector<8x128xbf16>, vector<72x128xf32> -> vector<72x128xf32>
    %52 = arith.addf %46, %51 : vector<72x128xf32>
    %53 = tpu.iota {dimensions = array<i32: 1>} : vector<1x72xi32>
    %c9_i32 = arith.constant 9 : i32
    %c0_i32 = arith.constant 0 : i32
    %54 = arith.cmpi eq, %c9_i32, %c0_i32 : i32
    %c1_i32 = arith.constant 1 : i32
    %55 = arith.select %54, %c1_i32, %c9_i32 : i32
    %56 = vector.broadcast %55 : i32 to vector<1x72xi32>
    %57 = arith.remsi %53, %56 : vector<1x72xi32>
    %c0_i32_46 = arith.constant 0 : i32
    %58 = vector.broadcast %c0_i32_46 : i32 to vector<1x72xi32>
    %59 = arith.cmpi ne, %57, %58 : vector<1x72xi32>
    %c0_i32_47 = arith.constant 0 : i32
    %60 = vector.broadcast %c0_i32_47 : i32 to vector<1x72xi32>
    %61 = arith.cmpi slt, %57, %60 : vector<1x72xi32>
    %c0_i32_48 = arith.constant 0 : i32
    %62 = arith.cmpi slt, %55, %c0_i32_48 : i32
    %63 = vector.broadcast %62 : i1 to vector<1x72xi1>
    %64 = vector.broadcast %63 : vector<1x72xi1> to vector<1x72xi1>
    %65 = arith.xori %61, %64 : vector<1x72xi1>
    %66 = arith.andi %65, %59 : vector<1x72xi1>
    %67 = vector.broadcast %55 : i32 to vector<1x72xi32>
    %68 = arith.addi %57, %67 : vector<1x72xi32>
    %69 = arith.select %66, %68, %57 : vector<1x72xi1>, vector<1x72xi32>
    %c8_i32 = arith.constant 8 : i32
    %70 = vector.broadcast %c8_i32 : i32 to vector<1x72xi32>
    %71 = arith.cmpi slt, %69, %70 : vector<1x72xi32>
    %72 = arith.extui %71 : vector<1x72xi1> to vector<1x72xi32>
    %73 = arith.sitofp %72 : vector<1x72xi32> to vector<1x72xf32>
    %cst_49 = arith.constant dense<0.000000e+00> : vector<1x128xf32>
    %74 = tpu.matmul %73, %52, %cst_49 {dimension_numbers = #tpu.dot_dimension_numbers<[1], [0], [0], [1], [0, 0, 1, 1], [], []>} : vector<1x72xf32>, vector<72x128xf32>, vector<1x128xf32> -> vector<1x128xf32>
    %cst_50 = arith.constant 1.562500e-02 : f32
    %75 = vector.broadcast %cst_50 : f32 to vector<1x128xf32>
    %76 = arith.mulf %74, %75 : vector<1x128xf32>
    %77 = arith.mulf %52, %52 : vector<72x128xf32>
    %cst_51 = arith.constant dense<0.000000e+00> : vector<1x128xf32>
    %78 = tpu.matmul %73, %77, %cst_51 {dimension_numbers = #tpu.dot_dimension_numbers<[1], [0], [0], [1], [0, 0, 1, 1], [], []>} : vector<1x72xf32>, vector<72x128xf32>, vector<1x128xf32> -> vector<1x128xf32>
    %cst_52 = arith.constant 1.562500e-02 : f32
    %79 = vector.broadcast %cst_52 : f32 to vector<1x128xf32>
    %80 = arith.mulf %78, %79 : vector<1x128xf32>
    %81 = arith.mulf %76, %76 : vector<1x128xf32>
    %82 = arith.subf %80, %81 : vector<1x128xf32>
    %cst_53 = arith.constant 0.000000e+00 : f32
    %83 = vector.broadcast %cst_53 : f32 to vector<1x128xf32>
    %84 = arith.maximumf %82, %83 : vector<1x128xf32>
    %c0_54 = arith.constant 0 : index
    %c0_55 = arith.constant 0 : index
    %85 = vector.load %arg3[%c0_54, %c0_55] : memref<1x128xf32, #tpu.memory_space<vmem>>, vector<1x128xf32>
    %cst_56 = arith.constant 9.99999974E-6 : f32
    %86 = vector.broadcast %cst_56 : f32 to vector<1x128xf32>
    %87 = arith.addf %84, %86 : vector<1x128xf32>
    %88 = math.rsqrt %87 : vector<1x128xf32>
    %89 = arith.mulf %85, %88 : vector<1x128xf32>
    %c0_57 = arith.constant 0 : index
    %c0_58 = arith.constant 0 : index
    %90 = vector.load %arg4[%c0_57, %c0_58] : memref<1x128xf32, #tpu.memory_space<vmem>>, vector<1x128xf32>
    %91 = arith.mulf %76, %89 : vector<1x128xf32>
    %92 = arith.subf %90, %91 : vector<1x128xf32>
    %93 = vector.broadcast %89 : vector<1x128xf32> to vector<72x128xf32>
    %94 = arith.mulf %52, %93 : vector<72x128xf32>
    %95 = vector.broadcast %92 : vector<1x128xf32> to vector<72x128xf32>
    %96 = arith.addf %94, %95 : vector<72x128xf32>
    %cst_59 = arith.constant 0.000000e+00 : f32
    %97 = vector.broadcast %cst_59 : f32 to vector<72x128xf32>
    %98 = arith.maximumf %96, %97 : vector<72x128xf32>
    %99 = arith.truncf %98 : vector<72x128xf32> to vector<72x128xbf16>
    %c0_60 = arith.constant 0 : index
    %c0_61 = arith.constant 0 : index
    %c0_62 = arith.constant 0 : index
    %100 = vector.load %arg5[%c0_60, %c0_61, %c0_62] : memref<1x72x128xbf16, #tpu.memory_space<vmem>>, vector<1x72x128xbf16>
    %101 = vector.shape_cast %100 : vector<1x72x128xbf16> to vector<72x128xbf16>
    %102 = vector.shape_cast %99 : vector<72x128xbf16> to vector<1x72x128xbf16>
    tpu.vector_store %arg5[%c0_60, %c0_61, %c0_62], %102 {strides = array<i32>} : memref<1x72x128xbf16, #tpu.memory_space<vmem>>, vector<1x72x128xbf16>,
    return
  }
  func.func @transform_0(%arg0: i32) -> (i32, i32, i32) {
    %c0_i32 = arith.constant 0 : i32
    %c0_i32_0 = arith.constant 0 : i32
    %c0_i32_1 = arith.constant 0 : i32
    return %arg0, %c0_i32, %c0_i32_0 : i32, i32, i32
  }
  func.func @transform_1(%arg0: i32) -> (i32, i32, i32) {
    %c0_i32 = arith.constant 0 : i32
    %c0_i32_0 = arith.constant 0 : i32
    %c0_i32_1 = arith.constant 0 : i32
    %c0_i32_2 = arith.constant 0 : i32
    return %c0_i32, %c0_i32_0, %c0_i32_1 : i32, i32, i32
  }
  func.func @transform_2(%arg0: i32) -> (i32, i32) {
    %c0_i32 = arith.constant 0 : i32
    %c0_i32_0 = arith.constant 0 : i32
    %c0_i32_1 = arith.constant 0 : i32
    return %c0_i32, %c0_i32_0 : i32, i32
  }
  func.func @transform_3(%arg0: i32) -> (i32, i32) {
    %c0_i32 = arith.constant 0 : i32
    %c0_i32_0 = arith.constant 0 : i32
    %c0_i32_1 = arith.constant 0 : i32
    return %c0_i32, %c0_i32_0 : i32, i32
  }
  func.func @transform_4(%arg0: i32) -> (i32, i32, i32) {
    %c0_i32 = arith.constant 0 : i32
    %c0_i32_0 = arith.constant 0 : i32
    %c0_i32_1 = arith.constant 0 : i32
    return %arg0, %c0_i32, %c0_i32_0 : i32, i32, i32
  }
}

module attributes {stable_mosaic.version = 11 : i64} {
  func.func @_conv_in_relu_kernel(%arg0: i32, %arg1: memref<1x128x8xbf16, #tpu.memory_space<vmem>>, %arg2: memref<9x8x128xbf16, #tpu.memory_space<vmem>>, %arg3: memref<1x128xf32, #tpu.memory_space<vmem>>, %arg4: memref<1x128xf32, #tpu.memory_space<vmem>>, %arg5: memref<1x20x128xbf16, #tpu.memory_space<vmem>>) attributes {dimension_semantics = [#tpu.dimension_semantics<parallel>], iteration_bounds = array<i64: 2>, scalar_prefetch = 0 : i64, scratch_operands = 0 : i64, tpu.core_type = #tpu.core_type<tc>, window_params = [{transform_indices = @transform_0, window_bounds = array<i64: 1, 128, 8>}, {pipeline_mode = #tpu.pipeline_mode<synchronous>, transform_indices = @transform_1, window_bounds = array<i64: 9, 8, 128>}, {pipeline_mode = #tpu.pipeline_mode<synchronous>, transform_indices = @transform_2, window_bounds = array<i64: 1, 128>}, {pipeline_mode = #tpu.pipeline_mode<synchronous>, transform_indices = @transform_3, window_bounds = array<i64: 1, 128>}, {transform_indices = @transform_4, window_bounds = array<i64: 1, 20, 128>}]} {
    %c0 = arith.constant 0 : index
    %c0_0 = arith.constant 0 : index
    %c0_1 = arith.constant 0 : index
    %0 = vector.load %arg1[%c0, %c0_0, %c0_1] : memref<1x128x8xbf16, #tpu.memory_space<vmem>>, vector<1x20x8xbf16>
    %1 = vector.shape_cast %0 : vector<1x20x8xbf16> to vector<20x8xbf16>
    %c0_2 = arith.constant 0 : index
    %c0_3 = arith.constant 0 : index
    %c0_4 = arith.constant 0 : index
    %2 = vector.load %arg2[%c0_2, %c0_3, %c0_4] : memref<9x8x128xbf16, #tpu.memory_space<vmem>>, vector<1x8x128xbf16>
    %3 = vector.shape_cast %2 : vector<1x8x128xbf16> to vector<8x128xbf16>
    %cst = arith.constant dense<0.000000e+00> : vector<20x128xf32>
    %4 = tpu.matmul %1, %3, %cst {dimension_numbers = #tpu.dot_dimension_numbers<[1], [0], [0], [1], [0, 0, 1, 1], [], []>} : vector<20x8xbf16>, vector<8x128xbf16>, vector<20x128xf32> -> vector<20x128xf32>
    %c0_5 = arith.constant 0 : index
    %c32 = arith.constant 32 : index
    %c0_6 = arith.constant 0 : index
    %5 = vector.load %arg1[%c0_5, %c32, %c0_6] : memref<1x128x8xbf16, #tpu.memory_space<vmem>>, vector<1x20x8xbf16>
    %6 = vector.shape_cast %5 : vector<1x20x8xbf16> to vector<20x8xbf16>
    %c1 = arith.constant 1 : index
    %c0_7 = arith.constant 0 : index
    %c0_8 = arith.constant 0 : index
    %7 = vector.load %arg2[%c1, %c0_7, %c0_8] : memref<9x8x128xbf16, #tpu.memory_space<vmem>>, vector<1x8x128xbf16>
    %8 = vector.shape_cast %7 : vector<1x8x128xbf16> to vector<8x128xbf16>
    %cst_9 = arith.constant dense<0.000000e+00> : vector<20x128xf32>
    %9 = tpu.matmul %6, %8, %cst_9 {dimension_numbers = #tpu.dot_dimension_numbers<[1], [0], [0], [1], [0, 0, 1, 1], [], []>} : vector<20x8xbf16>, vector<8x128xbf16>, vector<20x128xf32> -> vector<20x128xf32>
    %10 = arith.addf %4, %9 : vector<20x128xf32>
    %c0_10 = arith.constant 0 : index
    %c1_11 = arith.constant 1 : index
    %c0_12 = arith.constant 0 : index
    %11 = vector.load %arg1[%c0_10, %c1_11, %c0_12] : memref<1x128x8xbf16, #tpu.memory_space<vmem>>, vector<1x20x8xbf16>
    %12 = vector.shape_cast %11 : vector<1x20x8xbf16> to vector<20x8xbf16>
    %c2 = arith.constant 2 : index
    %c0_13 = arith.constant 0 : index
    %c0_14 = arith.constant 0 : index
    %13 = vector.load %arg2[%c2, %c0_13, %c0_14] : memref<9x8x128xbf16, #tpu.memory_space<vmem>>, vector<1x8x128xbf16>
    %14 = vector.shape_cast %13 : vector<1x8x128xbf16> to vector<8x128xbf16>
    %cst_15 = arith.constant dense<0.000000e+00> : vector<20x128xf32>
    %15 = tpu.matmul %12, %14, %cst_15 {dimension_numbers = #tpu.dot_dimension_numbers<[1], [0], [0], [1], [0, 0, 1, 1], [], []>} : vector<20x8xbf16>, vector<8x128xbf16>, vector<20x128xf32> -> vector<20x128xf32>
    %16 = arith.addf %10, %15 : vector<20x128xf32>
    %c0_16 = arith.constant 0 : index
    %c64 = arith.constant 64 : index
    %c0_17 = arith.constant 0 : index
    %17 = vector.load %arg1[%c0_16, %c64, %c0_17] : memref<1x128x8xbf16, #tpu.memory_space<vmem>>, vector<1x20x8xbf16>
    %18 = vector.shape_cast %17 : vector<1x20x8xbf16> to vector<20x8xbf16>
    %c3 = arith.constant 3 : index
    %c0_18 = arith.constant 0 : index
    %c0_19 = arith.constant 0 : index
    %19 = vector.load %arg2[%c3, %c0_18, %c0_19] : memref<9x8x128xbf16, #tpu.memory_space<vmem>>, vector<1x8x128xbf16>
    %20 = vector.shape_cast %19 : vector<1x8x128xbf16> to vector<8x128xbf16>
    %cst_20 = arith.constant dense<0.000000e+00> : vector<20x128xf32>
    %21 = tpu.matmul %18, %20, %cst_20 {dimension_numbers = #tpu.dot_dimension_numbers<[1], [0], [0], [1], [0, 0, 1, 1], [], []>} : vector<20x8xbf16>, vector<8x128xbf16>, vector<20x128xf32> -> vector<20x128xf32>
    %22 = arith.addf %16, %21 : vector<20x128xf32>
    %c0_21 = arith.constant 0 : index
    %c96 = arith.constant 96 : index
    %c0_22 = arith.constant 0 : index
    %23 = vector.load %arg1[%c0_21, %c96, %c0_22] : memref<1x128x8xbf16, #tpu.memory_space<vmem>>, vector<1x20x8xbf16>
    %24 = vector.shape_cast %23 : vector<1x20x8xbf16> to vector<20x8xbf16>
    %c4 = arith.constant 4 : index
    %c0_23 = arith.constant 0 : index
    %c0_24 = arith.constant 0 : index
    %25 = vector.load %arg2[%c4, %c0_23, %c0_24] : memref<9x8x128xbf16, #tpu.memory_space<vmem>>, vector<1x8x128xbf16>
    %26 = vector.shape_cast %25 : vector<1x8x128xbf16> to vector<8x128xbf16>
    %cst_25 = arith.constant dense<0.000000e+00> : vector<20x128xf32>
    %27 = tpu.matmul %24, %26, %cst_25 {dimension_numbers = #tpu.dot_dimension_numbers<[1], [0], [0], [1], [0, 0, 1, 1], [], []>} : vector<20x8xbf16>, vector<8x128xbf16>, vector<20x128xf32> -> vector<20x128xf32>
    %28 = arith.addf %22, %27 : vector<20x128xf32>
    %c0_26 = arith.constant 0 : index
    %c65 = arith.constant 65 : index
    %c0_27 = arith.constant 0 : index
    %29 = vector.load %arg1[%c0_26, %c65, %c0_27] : memref<1x128x8xbf16, #tpu.memory_space<vmem>>, vector<1x20x8xbf16>
    %30 = vector.shape_cast %29 : vector<1x20x8xbf16> to vector<20x8xbf16>
    %c5 = arith.constant 5 : index
    %c0_28 = arith.constant 0 : index
    %c0_29 = arith.constant 0 : index
    %31 = vector.load %arg2[%c5, %c0_28, %c0_29] : memref<9x8x128xbf16, #tpu.memory_space<vmem>>, vector<1x8x128xbf16>
    %32 = vector.shape_cast %31 : vector<1x8x128xbf16> to vector<8x128xbf16>
    %cst_30 = arith.constant dense<0.000000e+00> : vector<20x128xf32>
    %33 = tpu.matmul %30, %32, %cst_30 {dimension_numbers = #tpu.dot_dimension_numbers<[1], [0], [0], [1], [0, 0, 1, 1], [], []>} : vector<20x8xbf16>, vector<8x128xbf16>, vector<20x128xf32> -> vector<20x128xf32>
    %34 = arith.addf %28, %33 : vector<20x128xf32>
    %c0_31 = arith.constant 0 : index
    %c5_32 = arith.constant 5 : index
    %c0_33 = arith.constant 0 : index
    %35 = vector.load %arg1[%c0_31, %c5_32, %c0_33] : memref<1x128x8xbf16, #tpu.memory_space<vmem>>, vector<1x20x8xbf16>
    %36 = vector.shape_cast %35 : vector<1x20x8xbf16> to vector<20x8xbf16>
    %c6 = arith.constant 6 : index
    %c0_34 = arith.constant 0 : index
    %c0_35 = arith.constant 0 : index
    %37 = vector.load %arg2[%c6, %c0_34, %c0_35] : memref<9x8x128xbf16, #tpu.memory_space<vmem>>, vector<1x8x128xbf16>
    %38 = vector.shape_cast %37 : vector<1x8x128xbf16> to vector<8x128xbf16>
    %cst_36 = arith.constant dense<0.000000e+00> : vector<20x128xf32>
    %39 = tpu.matmul %36, %38, %cst_36 {dimension_numbers = #tpu.dot_dimension_numbers<[1], [0], [0], [1], [0, 0, 1, 1], [], []>} : vector<20x8xbf16>, vector<8x128xbf16>, vector<20x128xf32> -> vector<20x128xf32>
    %40 = arith.addf %34, %39 : vector<20x128xf32>
    %c0_37 = arith.constant 0 : index
    %c37 = arith.constant 37 : index
    %c0_38 = arith.constant 0 : index
    %41 = vector.load %arg1[%c0_37, %c37, %c0_38] : memref<1x128x8xbf16, #tpu.memory_space<vmem>>, vector<1x20x8xbf16>
    %42 = vector.shape_cast %41 : vector<1x20x8xbf16> to vector<20x8xbf16>
    %c7 = arith.constant 7 : index
    %c0_39 = arith.constant 0 : index
    %c0_40 = arith.constant 0 : index
    %43 = vector.load %arg2[%c7, %c0_39, %c0_40] : memref<9x8x128xbf16, #tpu.memory_space<vmem>>, vector<1x8x128xbf16>
    %44 = vector.shape_cast %43 : vector<1x8x128xbf16> to vector<8x128xbf16>
    %cst_41 = arith.constant dense<0.000000e+00> : vector<20x128xf32>
    %45 = tpu.matmul %42, %44, %cst_41 {dimension_numbers = #tpu.dot_dimension_numbers<[1], [0], [0], [1], [0, 0, 1, 1], [], []>} : vector<20x8xbf16>, vector<8x128xbf16>, vector<20x128xf32> -> vector<20x128xf32>
    %46 = arith.addf %40, %45 : vector<20x128xf32>
    %c0_42 = arith.constant 0 : index
    %c6_43 = arith.constant 6 : index
    %c0_44 = arith.constant 0 : index
    %47 = vector.load %arg1[%c0_42, %c6_43, %c0_44] : memref<1x128x8xbf16, #tpu.memory_space<vmem>>, vector<1x20x8xbf16>
    %48 = vector.shape_cast %47 : vector<1x20x8xbf16> to vector<20x8xbf16>
    %c8 = arith.constant 8 : index
    %c0_45 = arith.constant 0 : index
    %c0_46 = arith.constant 0 : index
    %49 = vector.load %arg2[%c8, %c0_45, %c0_46] : memref<9x8x128xbf16, #tpu.memory_space<vmem>>, vector<1x8x128xbf16>
    %50 = vector.shape_cast %49 : vector<1x8x128xbf16> to vector<8x128xbf16>
    %cst_47 = arith.constant dense<0.000000e+00> : vector<20x128xf32>
    %51 = tpu.matmul %48, %50, %cst_47 {dimension_numbers = #tpu.dot_dimension_numbers<[1], [0], [0], [1], [0, 0, 1, 1], [], []>} : vector<20x8xbf16>, vector<8x128xbf16>, vector<20x128xf32> -> vector<20x128xf32>
    %52 = arith.addf %46, %51 : vector<20x128xf32>
    %53 = tpu.iota {dimensions = array<i32: 1>} : vector<1x20xi32>
    %c5_i32 = arith.constant 5 : i32
    %c0_i32 = arith.constant 0 : i32
    %54 = arith.cmpi eq, %c5_i32, %c0_i32 : i32
    %c1_i32 = arith.constant 1 : i32
    %55 = arith.select %54, %c1_i32, %c5_i32 : i32
    %56 = vector.broadcast %55 : i32 to vector<1x20xi32>
    %57 = arith.remsi %53, %56 : vector<1x20xi32>
    %c0_i32_48 = arith.constant 0 : i32
    %58 = vector.broadcast %c0_i32_48 : i32 to vector<1x20xi32>
    %59 = arith.cmpi ne, %57, %58 : vector<1x20xi32>
    %c0_i32_49 = arith.constant 0 : i32
    %60 = vector.broadcast %c0_i32_49 : i32 to vector<1x20xi32>
    %61 = arith.cmpi slt, %57, %60 : vector<1x20xi32>
    %c0_i32_50 = arith.constant 0 : i32
    %62 = arith.cmpi slt, %55, %c0_i32_50 : i32
    %63 = vector.broadcast %62 : i1 to vector<1x20xi1>
    %64 = vector.broadcast %63 : vector<1x20xi1> to vector<1x20xi1>
    %65 = arith.xori %61, %64 : vector<1x20xi1>
    %66 = arith.andi %65, %59 : vector<1x20xi1>
    %67 = vector.broadcast %55 : i32 to vector<1x20xi32>
    %68 = arith.addi %57, %67 : vector<1x20xi32>
    %69 = arith.select %66, %68, %57 : vector<1x20xi1>, vector<1x20xi32>
    %c4_i32 = arith.constant 4 : i32
    %70 = vector.broadcast %c4_i32 : i32 to vector<1x20xi32>
    %71 = arith.cmpi slt, %69, %70 : vector<1x20xi32>
    %72 = arith.extui %71 : vector<1x20xi1> to vector<1x20xi32>
    %73 = arith.sitofp %72 : vector<1x20xi32> to vector<1x20xf32>
    %cst_51 = arith.constant dense<0.000000e+00> : vector<1x128xf32>
    %74 = tpu.matmul %73, %52, %cst_51 {dimension_numbers = #tpu.dot_dimension_numbers<[1], [0], [0], [1], [0, 0, 1, 1], [], []>} : vector<1x20xf32>, vector<20x128xf32>, vector<1x128xf32> -> vector<1x128xf32>
    %cst_52 = arith.constant 6.250000e-02 : f32
    %75 = vector.broadcast %cst_52 : f32 to vector<1x128xf32>
    %76 = arith.mulf %74, %75 : vector<1x128xf32>
    %77 = arith.mulf %52, %52 : vector<20x128xf32>
    %cst_53 = arith.constant dense<0.000000e+00> : vector<1x128xf32>
    %78 = tpu.matmul %73, %77, %cst_53 {dimension_numbers = #tpu.dot_dimension_numbers<[1], [0], [0], [1], [0, 0, 1, 1], [], []>} : vector<1x20xf32>, vector<20x128xf32>, vector<1x128xf32> -> vector<1x128xf32>
    %cst_54 = arith.constant 6.250000e-02 : f32
    %79 = vector.broadcast %cst_54 : f32 to vector<1x128xf32>
    %80 = arith.mulf %78, %79 : vector<1x128xf32>
    %81 = arith.mulf %76, %76 : vector<1x128xf32>
    %82 = arith.subf %80, %81 : vector<1x128xf32>
    %cst_55 = arith.constant 0.000000e+00 : f32
    %83 = vector.broadcast %cst_55 : f32 to vector<1x128xf32>
    %84 = arith.maximumf %82, %83 : vector<1x128xf32>
    %c0_56 = arith.constant 0 : index
    %c0_57 = arith.constant 0 : index
    %85 = vector.load %arg3[%c0_56, %c0_57] : memref<1x128xf32, #tpu.memory_space<vmem>>, vector<1x128xf32>
    %cst_58 = arith.constant 9.99999974E-6 : f32
    %86 = vector.broadcast %cst_58 : f32 to vector<1x128xf32>
    %87 = arith.addf %84, %86 : vector<1x128xf32>
    %88 = math.rsqrt %87 : vector<1x128xf32>
    %89 = arith.mulf %85, %88 : vector<1x128xf32>
    %c0_59 = arith.constant 0 : index
    %c0_60 = arith.constant 0 : index
    %90 = vector.load %arg4[%c0_59, %c0_60] : memref<1x128xf32, #tpu.memory_space<vmem>>, vector<1x128xf32>
    %91 = arith.mulf %76, %89 : vector<1x128xf32>
    %92 = arith.subf %90, %91 : vector<1x128xf32>
    %93 = vector.broadcast %89 : vector<1x128xf32> to vector<20x128xf32>
    %94 = arith.mulf %52, %93 : vector<20x128xf32>
    %95 = vector.broadcast %92 : vector<1x128xf32> to vector<20x128xf32>
    %96 = arith.addf %94, %95 : vector<20x128xf32>
    %cst_61 = arith.constant 0.000000e+00 : f32
    %97 = vector.broadcast %cst_61 : f32 to vector<20x128xf32>
    %98 = arith.maximumf %96, %97 : vector<20x128xf32>
    %99 = arith.truncf %98 : vector<20x128xf32> to vector<20x128xbf16>
    %c0_62 = arith.constant 0 : index
    %c0_63 = arith.constant 0 : index
    %c0_64 = arith.constant 0 : index
    %100 = vector.load %arg5[%c0_62, %c0_63, %c0_64] : memref<1x20x128xbf16, #tpu.memory_space<vmem>>, vector<1x20x128xbf16>
    %101 = vector.shape_cast %100 : vector<1x20x128xbf16> to vector<20x128xbf16>
    %102 = vector.shape_cast %99 : vector<20x128xbf16> to vector<1x20x128xbf16>
    tpu.vector_store %arg5[%c0_62, %c0_63, %c0_64], %102 {strides = array<i32>} : memref<1x20x128xbf16, #tpu.memory_space<vmem>>, vector<1x20x128xbf16>,
    return
  }
  func.func @transform_0(%arg0: i32) -> (i32, i32, i32) {
    %c0_i32 = arith.constant 0 : i32
    %c0_i32_0 = arith.constant 0 : i32
    %c0_i32_1 = arith.constant 0 : i32
    return %arg0, %c0_i32, %c0_i32_0 : i32, i32, i32
  }
  func.func @transform_1(%arg0: i32) -> (i32, i32, i32) {
    %c0_i32 = arith.constant 0 : i32
    %c0_i32_0 = arith.constant 0 : i32
    %c0_i32_1 = arith.constant 0 : i32
    %c0_i32_2 = arith.constant 0 : i32
    return %c0_i32, %c0_i32_0, %c0_i32_1 : i32, i32, i32
  }
  func.func @transform_2(%arg0: i32) -> (i32, i32) {
    %c0_i32 = arith.constant 0 : i32
    %c0_i32_0 = arith.constant 0 : i32
    %c0_i32_1 = arith.constant 0 : i32
    return %c0_i32, %c0_i32_0 : i32, i32
  }
  func.func @transform_3(%arg0: i32) -> (i32, i32) {
    %c0_i32 = arith.constant 0 : i32
    %c0_i32_0 = arith.constant 0 : i32
    %c0_i32_1 = arith.constant 0 : i32
    return %c0_i32, %c0_i32_0 : i32, i32
  }
  func.func @transform_4(%arg0: i32) -> (i32, i32, i32) {
    %c0_i32 = arith.constant 0 : i32
    %c0_i32_0 = arith.constant 0 : i32
    %c0_i32_1 = arith.constant 0 : i32
    return %arg0, %c0_i32, %c0_i32_0 : i32, i32, i32
  }
}

module attributes {stable_mosaic.version = 11 : i64} {
  func.func @_cls_head_kernel(%arg0: memref<2x256xbf16, #tpu.memory_space<vmem>>, %arg1: memref<256x128xbf16, #tpu.memory_space<vmem>>, %arg2: memref<1x128xf32, #tpu.memory_space<vmem>>, %arg3: memref<128x128xbf16, #tpu.memory_space<vmem>>, %arg4: memref<1x128xf32, #tpu.memory_space<vmem>>, %arg5: memref<2x128xf32, #tpu.memory_space<vmem>>) attributes {dimension_semantics = [], scalar_prefetch = 0 : i64, scratch_operands = 0 : i64, tpu.core_type = #tpu.core_type<tc>} {
    %c0 = arith.constant 0 : index
    %c0_0 = arith.constant 0 : index
    %0 = vector.load %arg0[%c0, %c0_0] : memref<2x256xbf16, #tpu.memory_space<vmem>>, vector<2x256xbf16>
    %c0_1 = arith.constant 0 : index
    %c0_2 = arith.constant 0 : index
    %1 = vector.load %arg1[%c0_1, %c0_2] : memref<256x128xbf16, #tpu.memory_space<vmem>>, vector<256x128xbf16>
    %cst = arith.constant dense<0.000000e+00> : vector<2x128xf32>
    %2 = tpu.matmul %0, %1, %cst {dimension_numbers = #tpu.dot_dimension_numbers<[1], [0], [0], [1], [0, 0, 1, 1], [], []>} : vector<2x256xbf16>, vector<256x128xbf16>, vector<2x128xf32> -> vector<2x128xf32>
    %c0_3 = arith.constant 0 : index
    %c0_4 = arith.constant 0 : index
    %3 = vector.load %arg2[%c0_3, %c0_4] : memref<1x128xf32, #tpu.memory_space<vmem>>, vector<1x128xf32>
    %4 = vector.broadcast %3 : vector<1x128xf32> to vector<2x128xf32>
    %5 = arith.addf %2, %4 : vector<2x128xf32>
    %6 = arith.truncf %5 : vector<2x128xf32> to vector<2x128xbf16>
    %c0_5 = arith.constant 0 : index
    %c0_6 = arith.constant 0 : index
    %7 = vector.load %arg3[%c0_5, %c0_6] : memref<128x128xbf16, #tpu.memory_space<vmem>>, vector<128x128xbf16>
    %cst_7 = arith.constant dense<0.000000e+00> : vector<2x128xf32>
    %8 = tpu.matmul %6, %7, %cst_7 {dimension_numbers = #tpu.dot_dimension_numbers<[1], [0], [0], [1], [0, 0, 1, 1], [], []>} : vector<2x128xbf16>, vector<128x128xbf16>, vector<2x128xf32> -> vector<2x128xf32>
    %c0_8 = arith.constant 0 : index
    %c0_9 = arith.constant 0 : index
    %9 = vector.load %arg4[%c0_8, %c0_9] : memref<1x128xf32, #tpu.memory_space<vmem>>, vector<1x128xf32>
    %10 = vector.broadcast %9 : vector<1x128xf32> to vector<2x128xf32>
    %11 = arith.addf %8, %10 : vector<2x128xf32>
    %c0_10 = arith.constant 0 : index
    %c0_11 = arith.constant 0 : index
    %12 = vector.load %arg5[%c0_10, %c0_11] : memref<2x128xf32, #tpu.memory_space<vmem>>, vector<2x128xf32>
    tpu.vector_store %arg5[%c0_10, %c0_11], %11 {strides = array<i32>} : memref<2x128xf32, #tpu.memory_space<vmem>>, vector<2x128xf32>,
    return
  }
}

</mosaic_0001>

<llo_original>
// kernel: forward.5
$region0: #{forward.5}
  #allocation0 [shape = 'u32[]', space=smem, size = 0x4, offset = 0x4, fixed_abs, tag = 'smem constant byte address 0x4 - core index']
  #allocation1 [shape = 'u32[72,128]{1,0:T(1,128)}', space=vmem, size = 0x9000, scoped, tag = 'internal scratch']
  %s0 = inlined_call_operand.vmem [shape: bf16[2,256], index: 0, kind: input, shape index: {}]
  %s1 = inlined_call_operand.vmem [shape: bf16[256,128], index: 1, kind: input, shape index: {}]
  %s2 = inlined_call_operand.vmem [shape: f32[1,128], index: 2, kind: input, shape index: {}, may-alias: {2,4}]
  %s3 = inlined_call_operand.vmem [shape: bf16[128,128], index: 3, kind: input, shape index: {}]
  %s4 = inlined_call_operand.vmem [shape: f32[1,128], index: 4, kind: input, shape index: {}, may-alias: {2,4}]
  %s5 = inlined_call_operand.hbm [shape: f32[2,128], index: 5, kind: output, shape index: {}]
  %s6 = sld [smem:[#allocation0]]
  $region30: #{forward.5} parent=0
    _
  %s8 = ssub.s32 1, %s6
  %s9 = scalar_select 0, %s8, %s6
  $region1: #{forward.5} parent=0
    #allocation2 [shape = 'u8[1024]{0}', space=vmem, size = 0x400, scoped, tag = 'output window, operand 0, single buffered']
    #allocation3 [shape = 's32[1]{0}', space=sflag, size = 0x4, scoped, tag = 'scoped memory for forward.5']
    %10 = vsyncpa [#allocation3], 0
    // Predicated region
    $region2: #{forward.5} parent=1 // pred_check
      _
    $region3: #{forward.5} parent=1 // pred_check_branch
      %12 = sbr.rel (0) target = $region5
    $region4: #{forward.5} parent=1 // pred_region
      _
    $region5: #{forward.5} parent=1 // pred_fallthru
      _
    // Predicated region
    $region6: #{forward.5} parent=1 // pred_check
      _
    $region7: #{forward.5} parent=1 // pred_check_branch
      %14 = sbr.rel (0) target = $region9
    $region8: #{forward.5} parent=1 // pred_region
      _
    $region9: #{forward.5} parent=1 // pred_fallthru
      _
    // Predicated region
    $region10: #{forward.5} parent=1 // pred_check
      _
    $region11: #{forward.5} parent=1 // pred_check_branch
      %16 = sbr.rel (0) target = $region13
    $region12: #{forward.5} parent=1 // pred_region
      _
    $region13: #{forward.5} parent=1 // pred_fallthru
      _
    // Predicated region
    $region14: #{forward.5} parent=1 // pred_check
      _
    $region15: #{forward.5} parent=1 // pred_check_branch
      %18 = sbr.rel (0) target = $region17
    $region16: #{forward.5} parent=1 // pred_region
      _
    $region17: #{forward.5} parent=1 // pred_fallthru
      _
    // Predicated region
    $region18: #{forward.5} parent=1 // pred_check
      _
    $region19: #{forward.5} parent=1 // pred_check_branch
      %20 = sbr.rel (0) target = $region21
    $region20: #{forward.5} parent=1 // pred_region
      _
    $region21: #{forward.5} parent=1 // pred_fallthru
      _
    %v21 = vld [vmem:[%s0] sm:$0x3]
    %v22 = vld [vmem:[%s1] sm:$0xf]
    %v23 = vld [vmem:[%s1 + $0x4] sm:$0xf]
    %v24 = vld [vmem:[%s1 + $0x8] sm:$0xf]
    %v25 = vld [vmem:[%s1 + $0xc] sm:$0xf]
    %v26 = vld [vmem:[%s1 + $0x10] sm:$0xf]
    %v27 = vld [vmem:[%s1 + $0x14] sm:$0xf]
    %v28 = vld [vmem:[%s1 + $0x18] sm:$0xf]
    %v29 = vld [vmem:[%s1 + $0x1c] sm:$0xf]
    %v30 = vld [vmem:[%s1 + $0x20] sm:$0xf]
    %v31 = vld [vmem:[%s1 + $0x24] sm:$0xf]
    %v32 = vld [vmem:[%s1 + $0x28] sm:$0xf]
    %v33 = vld [vmem:[%s1 + $0x2c] sm:$0xf]
    %v34 = vld [vmem:[%s1 + $0x30] sm:$0xf]
    %v35 = vld [vmem:[%s1 + $0x34] sm:$0xf]
    %v36 = vld [vmem:[%s1 + $0x38] sm:$0xf]
    %v37 = vld [vmem:[%s1 + $0x3c] sm:$0xf]
    %v38 = vld [vmem:[%s1 + $0x40] sm:$0xf]
    %v39 = vld [vmem:[%s1 + $0x44] sm:$0xf]
    %v40 = vld [vmem:[%s1 + $0x48] sm:$0xf]
    %v41 = vld [vmem:[%s1 + $0x4c] sm:$0xf]
    %v42 = vld [vmem:[%s1 + $0x50] sm:$0xf]
    %v43 = vld [vmem:[%s1 + $0x54] sm:$0xf]
    %v44 = vld [vmem:[%s1 + $0x58] sm:$0xf]
    %v45 = vld [vmem:[%s1 + $0x5c] sm:$0xf]
    %v46 = vld [vmem:[%s1 + $0x60] sm:$0xf]
    %v47 = vld [vmem:[%s1 + $0x64] sm:$0xf]
    %v48 = vld [vmem:[%s1 + $0x68] sm:$0xf]
    %v49 = vld [vmem:[%s1 + $0x6c] sm:$0xf]
    %v50 = vld [vmem:[%s1 + $0x70] sm:$0xf]
    %v51 = vld [vmem:[%s1 + $0x74] sm:$0xf]
    %v52 = vld [vmem:[%s1 + $0x78] sm:$0xf]
    %v53 = vld [vmem:[%s1 + $0x7c] sm:$0xf]
    %v54 = vld [vmem:[%s2] sm:$0x1]
    %v56 = vperm.slane %v54, 0
    %59 = vst [vmem:[#allocation1] ss:$9 sm:$0xff] %v21
    %v60 = vld [vmem:[#allocation1] sm:$0xff]
    %v61 = vld [vmem:[#allocation1 + $0x9] sm:$0xff]
    %v96 = vunpack.c.l.b16 %v22
    %v97 = vunpack.c.l.b16 %v23
    %v98 = vunpack.c.l.b16 %v24
    %v99 = vunpack.c.l.b16 %v25
    %v100 = vunpack.c.l.b16 %v26
    %v101 = vunpack.c.l.b16 %v27
    %v102 = vunpack.c.l.b16 %v28
    %v103 = vunpack.c.l.b16 %v29
    %v104 = vunpack.c.l.b16 %v30
    %v105 = vunpack.c.l.b16 %v31
    %v106 = vunpack.c.l.b16 %v32
    %v107 = vunpack.c.l.b16 %v33
    %v108 = vunpack.c.l.b16 %v34
    %v109 = vunpack.c.l.b16 %v35
    %v110 = vunpack.c.l.b16 %v36
    %v111 = vunpack.c.l.b16 %v37
    %v112 = vunpack.c.l.b16 %v38
    %v113 = vunpack.c.l.b16 %v39
    %v114 = vunpack.c.l.b16 %v40
    %v115 = vunpack.c.l.b16 %v41
    %v116 = vunpack.c.l.b16 %v42
    %v117 = vunpack.c.l.b16 %v43
    %v118 = vunpack.c.l.b16 %v44
    %v119 = vunpack.c.l.b16 %v45
    %v120 = vunpack.c.l.b16 %v46
    %v121 = vunpack.c.l.b16 %v47
    %v122 = vunpack.c.l.b16 %v48
    %v123 = vunpack.c.l.b16 %v49
    %v124 = vunpack.c.l.b16 %v50
    %v125 = vunpack.c.l.b16 %v51
    %v126 = vunpack.c.l.b16 %v52
    %v127 = vunpack.c.l.b16 %v53
    %v128 = vpack.c.b16 %v97, %v96
    %v129 = vpack.c.b16 %v99, %v98
    %v130 = vpack.c.b16 %v101, %v100
    %v131 = vpack.c.b16 %v103, %v102
    %v132 = vpack.c.b16 %v105, %v104
    %v133 = vpack.c.b16 %v107, %v106
    %v134 = vpack.c.b16 %v109, %v108
    %v135 = vpack.c.b16 %v111, %v110
    %v136 = vpack.c.b16 %v113, %v112
    %v137 = vpack.c.b16 %v115, %v114
    %v138 = vpack.c.b16 %v117, %v116
    %v139 = vpack.c.b16 %v119, %v118
    %v140 = vpack.c.b16 %v121, %v120
    %v141 = vpack.c.b16 %v123, %v122
    %v142 = vpack.c.b16 %v125, %v124
    %v143 = vpack.c.b16 %v127, %v126
    %160 = vmatpush.bf16.msra.mxu0 %v135
    %161 = vmatpush.bf16.msra.mxu0 %v134
    %162 = vmatpush.bf16.msra.mxu0 %v133
    %163 = vmatpush.bf16.msra.mxu0 %v132
    %164 = vmatpush.bf16.msra.mxu0 %v131
    %165 = vmatpush.bf16.msra.mxu0 %v130
    %166 = vmatpush.bf16.msra.mxu0 %v129
    %167 = vmatpush.bf16.msra.mxu0 %v128
    %168 = vmatmul.bf16.gmra.mxu0 %v60
    %v169 = vpop.f32.mrf.mxu0
    %v170 = vadd.f32 %v56, %v169
    %v171 = vpop.f32.mrf.mxu0
    %172 = vdwg.mxu0
    %173 = vmatpush.bf16.msra.mxu0 %v143
    %174 = vmatpush.bf16.msra.mxu0 %v142
    %175 = vmatpush.bf16.msra.mxu0 %v141
    %176 = vmatpush.bf16.msra.mxu0 %v140
    %177 = vmatpush.bf16.msra.mxu0 %v139
    %178 = vmatpush.bf16.msra.mxu0 %v138
    %179 = vmatpush.bf16.msra.mxu0 %v137
    %180 = vmatpush.bf16.msra.mxu0 %v136
    %181 = vmatmul.bf16.gmra.mxu0 %v61
    %v182 = vpop.f32.mrf.mxu0
    %v183 = vadd.f32 %v170, %v182
    %v184 = vpop.f32.mrf.mxu0
    %185 = vdwg.mxu0
    %v186 = vpack.c.bf16 %v183, %v183
    %v187 = vld [vmem:[%s3] sm:$0xf]
    %v188 = vld [vmem:[%s3 + $0x4] sm:$0xf]
    %v189 = vld [vmem:[%s3 + $0x8] sm:$0xf]
    %v190 = vld [vmem:[%s3 + $0xc] sm:$0xf]
    %v191 = vld [vmem:[%s3 + $0x10] sm:$0xf]
    %v192 = vld [vmem:[%s3 + $0x14] sm:$0xf]
    %v193 = vld [vmem:[%s3 + $0x18] sm:$0xf]
    %v194 = vld [vmem:[%s3 + $0x1c] sm:$0xf]
    %v195 = vld [vmem:[%s3 + $0x20] sm:$0xf]
    %v196 = vld [vmem:[%s3 + $0x24] sm:$0xf]
    %v197 = vld [vmem:[%s3 + $0x28] sm:$0xf]
    %v198 = vld [vmem:[%s3 + $0x2c] sm:$0xf]
    %v199 = vld [vmem:[%s3 + $0x30] sm:$0xf]
    %v200 = vld [vmem:[%s3 + $0x34] sm:$0xf]
    %v201 = vld [vmem:[%s3 + $0x38] sm:$0xf]
    %v202 = vld [vmem:[%s3 + $0x3c] sm:$0xf]
    %v203 = vld [vmem:[%s4] sm:$0x1]
    %v205 = vperm.slane %v203, 0
    %v223 = vunpack.c.l.b16 %v187
    %v224 = vunpack.c.l.b16 %v188
    %v225 = vunpack.c.l.b16 %v189
    %v226 = vunpack.c.l.b16 %v190
    %v227 = vunpack.c.l.b16 %v191
    %v228 = vunpack.c.l.b16 %v192
    %v229 = vunpack.c.l.b16 %v193
    %v230 = vunpack.c.l.b16 %v194
    %v231 = vunpack.c.l.b16 %v195
    %v232 = vunpack.c.l.b16 %v196
    %v233 = vunpack.c.l.b16 %v197
    %v234 = vunpack.c.l.b16 %v198
    %v235 = vunpack.c.l.b16 %v199
    %v236 = vunpack.c.l.b16 %v200
    %v237 = vunpack.c.l.b16 %v201
    %v238 = vunpack.c.l.b16 %v202
    %v239 = vpack.c.b16 %v224, %v223
    %v240 = vpack.c.b16 %v226, %v225
    %v241 = vpack.c.b16 %v228, %v227
    %v242 = vpack.c.b16 %v230, %v229
    %v243 = vpack.c.b16 %v232, %v231
    %v244 = vpack.c.b16 %v234, %v233
    %v245 = vpack.c.b16 %v236, %v235
    %v246 = vpack.c.b16 %v238, %v237
    %255 = vmatpush.bf16.msra.mxu0 %v246
    %256 = vmatpush.bf16.msra.mxu0 %v245
    %257 = vmatpush.bf16.msra.mxu0 %v244
    %258 = vmatpush.bf16.msra.mxu0 %v243
    %259 = vmatpush.bf16.msra.mxu0 %v242
    %260 = vmatpush.bf16.msra.mxu0 %v241
    %261 = vmatpush.bf16.msra.mxu0 %v240
    %262 = vmatpush.bf16.msra.mxu0 %v239
    %263 = vmatmul.bf16.gmra.mxu0 %v186
    %v264 = vpop.f32.mrf.mxu0
    %v265 = vadd.f32 %v205, %v264
    %v266 = vpop.f32.mrf.mxu0
    %267 = vdwg.mxu0
    %268 = vst [vmem:[#allocation2] sm:$0x3] %v265
    // Predicated region
    $region22: #{forward.5} parent=1 // pred_check
      _
    $region23: #{forward.5} parent=1 // pred_check_branch
      %270 = sbr.rel (0) target = $region25
    $region24: #{forward.5} parent=1 // pred_region
      %272 = vsyncadd [#allocation3], 0
      %s274 = sshll.u32 [#allocation2], 4
      %s275 = int_to_ptr.vmem [resolvable:$true] %s274
      %s276 = sshll.u32 %s5, 4
      %s277 = int_to_ptr.hbm [resolvable:$true] %s276
      %279 = dma.vmem_to_hbm [thread:$0]  %s275, 32, %s277, [#allocation3]
    $region25: #{forward.5} parent=1 // pred_fallthru
      _
    // Predicated region
    $region26: #{forward.5} parent=1 // pred_check
      _
    $region27: #{forward.5} parent=1 // pred_check_branch
      %281 = sbr.rel (0) target = $region29
    $region28: #{forward.5} parent=1 // pred_region
      %283 = dma.done [#allocation3], 32
    $region29: #{forward.5} parent=1 // pred_fallthru
      _
    %284 = vsyncpa [#allocation3], 1

// kernel: forward.4
$region0: #{forward.4}
  #allocation0 [shape = 'u32[]', space=smem, size = 0x4, offset = 0x4, fixed_abs, tag = 'smem constant byte address 0x4 - core index']
  #allocation1 [shape = 'u32[72,128]{1,0:T(1,128)}', space=vmem, size = 0x9000, scoped, tag = 'internal scratch']
  %s0 = inlined_call_operand.vmem [shape: bf16[2,128,8], index: 0, kind: input, shape index: {}]
  %s1 = inlined_call_operand.vmem [shape: bf16[9,8,128], index: 1, kind: input, shape index: {}]
  %s2 = inlined_call_operand.vmem [shape: f32[1,128], index: 2, kind: input, shape index: {}]
  %s3 = inlined_call_operand.vmem [shape: f32[1,128], index: 3, kind: input, shape index: {}]
  %s4 = inlined_call_operand.vmem [shape: bf16[2,20,128], index: 4, kind: output, shape index: {}]
  %s5 = sld [smem:[#allocation0]]
  $region49: #{forward.4} parent=0
    _
  %s7 = ssub.s32 1, %s5
  %s8 = scalar_select 0, %s7, %s5
  loop: start=0, step=1, limit=4
  $region2: #{forward.4} parent=0 // loop_pre_header
    _
  $region3: #{forward.4} parent=0 // loop_header
    %s10 = sphi 0, %s14
    %p11 = scmp.ge.s32.totalorder %s10, 4
    %s20 = sphi 0, %s22
    %s23 = sphi 0, %s20
    %s24 = sphi 0, %s23
    %s40 = sphi 0, %s24
    %s44 = sphi 0, %s44
    %s46 = sphi 0, %s44
    %s47 = sphi 0, %s46
    %s61 = sphi 0, %s47
    %s65 = sphi 0, %s65
    %s67 = sphi 0, %s65
    %s68 = sphi 0, %s67
    %s82 = sphi 0, %s68
    %s86 = sphi 0, %s86
    %s88 = sphi 0, %s86
    %s89 = sphi 0, %s88
    %s103 = sphi 0, %s89
    %s109 = sphi 0, %s111
    %s112 = sphi 0, %s109
    %s113 = sphi 0, %s112
    %s129 = sphi 0, %s113
  $region4: #{forward.4} parent=0 // loop_header_branch
    %13 = sbr.rel (%p11) target = $region8
  $region5: #{forward.4} parent=0 // loop_body
    %s15 = ssub.s32 %s10, 1
    %s16 = ssub.s32 %s10, 2
    %s17 = sadd.s32 %s10, 1
    %s18 = ssub.s32 %s10, %s17
    %p19 = scmp.eq.s32.totalorder %s18, 0
    %s21 = sadd.s32 %s20, 1
    %s22 = scalar_select %p19, %s20, %s21
    %p25 = pneg %p19
    %p26 = scmp.eq.s32.totalorder %s10, 1
    %p27 = por %p25, %p26
    %p28 = scmp.ne.s32.totalorder %s20, %s23
    %p29 = scmp.eq.s32.totalorder %s10, 0
    %p30 = por %p28, %p29
    %p31 = scmp.ne.s32.totalorder %s20, %s23
    %p32 = scmp.eq.s32.totalorder %s15, 1
    %p33 = por %p31, %p32
    %p34 = scmp.ne.s32.totalorder %s23, %s24
    %p35 = scmp.eq.s32.totalorder %s15, 0
    %p36 = por %p34, %p35
    %p37 = scmp.ne.s32.totalorder %s23, %s24
    %p38 = scmp.eq.s32.totalorder %s16, 1
    %p39 = por %p37, %p38
    %p41 = scmp.ne.s32.totalorder %s24, %s40
    %p42 = scmp.eq.s32.totalorder %s16, 0
    %p43 = por %p41, %p42
    %s45 = sadd.s32 %s44, 1
    %p48 = scmp.eq.s32.totalorder %s10, 1
    %p49 = scmp.ne.s32.totalorder %s44, %s46
    %p50 = scmp.eq.s32.totalorder %s10, 0
    %p51 = por %p49, %p50
    %p52 = scmp.ne.s32.totalorder %s44, %s46
    %p53 = scmp.eq.s32.totalorder %s15, 1
    %p54 = por %p52, %p53
    %p55 = scmp.ne.s32.totalorder %s46, %s47
    %p56 = scmp.eq.s32.totalorder %s15, 0
    %p57 = por %p55, %p56
    %p58 = scmp.ne.s32.totalorder %s46, %s47
    %p59 = scmp.eq.s32.totalorder %s16, 1
    %p60 = por %p58, %p59
    %p62 = scmp.ne.s32.totalorder %s47, %s61
    %p63 = scmp.eq.s32.totalorder %s16, 0
    %p64 = por %p62, %p63
    %s66 = sadd.s32 %s65, 1
    %p69 = scmp.eq.s32.totalorder %s10, 1
    %p70 = scmp.ne.s32.totalorder %s65, %s67
    %p71 = scmp.eq.s32.totalorder %s10, 0
    %p72 = por %p70, %p71
    %p73 = scmp.ne.s32.totalorder %s65, %s67
    %p74 = scmp.eq.s32.totalorder %s15, 1
    %p75 = por %p73, %p74
    %p76 = scmp.ne.s32.totalorder %s67, %s68
    %p77 = scmp.eq.s32.totalorder %s15, 0
    %p78 = por %p76, %p77
    %p79 = scmp.ne.s32.totalorder %s67, %s68
    %p80 = scmp.eq.s32.totalorder %s16, 1
    %p81 = por %p79, %p80
    %p83 = scmp.ne.s32.totalorder %s68, %s82
    %p84 = scmp.eq.s32.totalorder %s16, 0
    %p85 = por %p83, %p84
    %s87 = sadd.s32 %s86, 1
    %p90 = scmp.eq.s32.totalorder %s10, 1
    %p91 = scmp.ne.s32.totalorder %s86, %s88
    %p92 = scmp.eq.s32.totalorder %s10, 0
    %p93 = por %p91, %p92
    %p94 = scmp.ne.s32.totalorder %s86, %s88
    %p95 = scmp.eq.s32.totalorder %s15, 1
    %p96 = por %p94, %p95
    %p97 = scmp.ne.s32.totalorder %s88, %s89
    %p98 = scmp.eq.s32.totalorder %s15, 0
    %p99 = por %p97, %p98
    %p100 = scmp.ne.s32.totalorder %s88, %s89
    %p101 = scmp.eq.s32.totalorder %s16, 1
    %p102 = por %p100, %p101
    %p104 = scmp.ne.s32.totalorder %s89, %s103
    %p105 = scmp.eq.s32.totalorder %s16, 0
    %p106 = por %p104, %p105
    %s107 = ssub.s32 %s10, %s17
    %p108 = scmp.eq.s32.totalorder %s107, 0
    %s110 = sadd.s32 %s109, 1
    %s111 = scalar_select %p108, %s109, %s110
    %p114 = pneg %p108
    %p115 = scmp.eq.s32.totalorder %s10, 1
    %p116 = por %p114, %p115
    %p117 = scmp.ne.s32.totalorder %s109, %s112
    %p118 = scmp.eq.s32.totalorder %s10, 0
    %p119 = por %p117, %p118
    %p120 = scmp.ne.s32.totalorder %s109, %s112
    %p121 = scmp.eq.s32.totalorder %s15, 1
    %p122 = por %p120, %p121
    %p123 = scmp.ne.s32.totalorder %s112, %s113
    %p124 = scmp.eq.s32.totalorder %s15, 0
    %p125 = por %p123, %p124
    %p126 = scmp.ne.s32.totalorder %s112, %s113
    %p127 = scmp.eq.s32.totalorder %s16, 1
    %p128 = por %p126, %p127
    %p130 = scmp.ne.s32.totalorder %s113, %s129
    %p131 = scmp.eq.s32.totalorder %s16, 0
    %p132 = por %p130, %p131
    %p133 = scmp.le.s32.totalorder 1, %s10
    %p134 = scmp.lt.s32.totalorder %s10, 3
    %p135 = pnand %p133, %p134
    %p136 = pneg %p135
    // Predicated region
    $region9: #{forward.4} parent=5 // pred_check
      _
    $region10: #{forward.4} parent=5 // pred_check_branch
      %138 = sbr.rel (%p135) target = $region12
    $region11: #{forward.4} parent=5 // pred_region
      %s139 = ssub.s32 %s10, 1
      // Predicated region
      $region13: #{forward.4} parent=11 // pred_check
        %p140 = pneg %p57
      $region14: #{forward.4} parent=11 // pred_check_branch
        %142 = sbr.rel (%p140) target = $region16
      $region15: #{forward.4} parent=11 // pred_region
        _
      $region16: #{forward.4} parent=11 // pred_fallthru
        _
      // Predicated region
      $region17: #{forward.4} parent=11 // pred_check
        %p143 = pneg %p78
      $region18: #{forward.4} parent=11 // pred_check_branch
        %145 = sbr.rel (%p143) target = $region20
      $region19: #{forward.4} parent=11 // pred_region
        _
      $region20: #{forward.4} parent=11 // pred_fallthru
        _
      // Predicated region
      $region21: #{forward.4} parent=11 // pred_check
        %p146 = pneg %p99
      $region22: #{forward.4} parent=11 // pred_check_branch
        %148 = sbr.rel (%p146) target = $region24
      $region23: #{forward.4} parent=11 // pred_region
        _
      $region24: #{forward.4} parent=11 // pred_fallthru
        _
    $region12: #{forward.4} parent=5 // pred_fallthru
      _
    %p149 = scmp.lt.s32.totalorder %s10, 2
    // Predicated region
    $region25: #{forward.4} parent=5 // pred_check
      %p150 = pneg %p149
    $region26: #{forward.4} parent=5 // pred_check_branch
      %152 = sbr.rel (%p150) target = $region28
    $region27: #{forward.4} parent=5 // pred_region
      // Predicated region
      $region29: #{forward.4} parent=27 // pred_check
        %p153 = pneg %p30
      $region30: #{forward.4} parent=27 // pred_check_branch
        %155 = sbr.rel (%p153) target = $region32
      $region31: #{forward.4} parent=27 // pred_region
        %p156 = scmp.lt.s32.totalorder %s10, 1
        %s157 = scalar_select %p156, %s10, 1
        %s158 = smul.addr %s157, 16
        %s159 = smul.addr %s158, 4
        %s160 = scalar_lea.vmem %s0, %s159
      $region32: #{forward.4} parent=27 // pred_fallthru
        _
    $region28: #{forward.4} parent=5 // pred_fallthru
      _
    %p161 = scmp.le.s32.totalorder 1, %s10
    %p162 = scmp.lt.s32.totalorder %s10, 3
    %p163 = pnand %p161, %p162
    %p164 = pneg %p163
    // Predicated region
    $region33: #{forward.4} parent=5 // pred_check
      _
    $region34: #{forward.4} parent=5 // pred_check_branch
      %166 = sbr.rel (%p163) target = $region36
    $region35: #{forward.4} parent=5 // pred_region
      %s167 = ssub.s32 %s10, 1
      %p168 = scmp.lt.s32.totalorder %s15, 1
      %s169 = scalar_select %p168, %s15, 1
      %s170 = smul.addr %s169, 16
      %s171 = smul.addr %s170, 4
      %s172 = scalar_lea.vmem %s0, %s171
      %p173 = pneg %p36
      %p174 = pneg %p33
      %p175 = pneg %p57
      %p176 = pneg %p54
      %p177 = pneg %p78
      %p178 = pneg %p75
      %p179 = pneg %p99
      %p180 = pneg %p96
      %p181 = pneg %p125
      %p182 = pneg %p122
      %p183 = scmp.lt.s32.totalorder %s15, 1
      %s184 = scalar_select %p183, %s15, 1
      %s185 = smul.addr %s184, 3
      %s186 = smul.addr %s185, 4
      %s187 = scalar_lea.vmem %s4, %s186
      %p188 = scmp.lt.s32.totalorder %s15, 1
      %s189 = scalar_select %p188, %s15, 1
      %s190 = smul.addr %s189, 16
      %s191 = smul.addr %s190, 4
      %s192 = scalar_lea.vmem %s0, %s191
      %p193 = scmp.lt.s32.totalorder %s15, 1
      %s194 = scalar_select %p193, %s15, 1
      %s195 = smul.addr %s194, 3
      %s196 = smul.addr %s195, 4
      %s197 = scalar_lea.vmem %s4, %s196
      %v199 = vld [vmem:[%s192] sm:$0xf]
      %v200 = vld [vmem:[%s192 + $0x4] sm:$0xf]
      %v201 = vld [vmem:[%s192 + $0x8] sm:$0x3]
      %v202 = vld [vmem:[%s1] sm:$0xf]
      %v203 = vld [vmem:[%s192 + $0x10] sm:$0xf]
      %v204 = vld [vmem:[%s192 + $0x14] sm:$0xf]
      %v205 = vld [vmem:[%s192 + $0x18] sm:$0x3]
      %s206 = scalar_lea.vmem %s1, 4
      %v207 = vld [vmem:[%s206] sm:$0xf]
      %v211 = vunpack.c.l.b16 %v203
      %v212 = vunpack.c.l.b16 %v204
      %v213 = vunpack.c.l.b16 %v205
      %v214 = vpack.c.b16 %v212, %v211
      %v215 = vpack.c.b16 %v213, %v213
      %vm216 = vcmask 64512
      %v218 = vsel %vm216, %v214, 0
      %v221 = vsel %vm216, %v215, 0
      %vm223 = vcmask 1043456
      %v225 = vsel %vm223, %v207, 0
      %227 = vmatpush.bf16.msra.mxu0 0
      %228 = vmatpush.bf16.msra.mxu0 0
      %229 = vmatpush.bf16.msra.mxu0 0
      %230 = vmatpush.bf16.msra.mxu0 0
      %231 = vmatpush.bf16.msra.mxu0 0
      %232 = vmatpush.bf16.msra.mxu0 0
      %233 = vmatpush.bf16.msra.mxu0 0
      %234 = vmatpush.bf16.msra.mxu0 %v225
      %235 = vmatmul.bf16.gmra.mxu0 %v218
      %v236 = vpop.f32.mrf.mxu0
      %v237 = vadd.f32 0.0, %v236
      %v238 = vpop.f32.mrf.mxu0
      %v239 = vadd.f32 0.0, %v238
      %240 = vmatmul.bf16.gmra.mxu0 %v221
      %v241 = vpop.f32.mrf.mxu0
      %v242 = vadd.f32 0.0, %v241
      %v243 = vpop.f32.mrf.mxu0
      %244 = vdwg.mxu0
      %v248 = vunpack.c.l.b16 %v199
      %v249 = vunpack.c.l.b16 %v200
      %v250 = vunpack.c.l.b16 %v201
      %v251 = vpack.c.b16 %v249, %v248
      %v252 = vpack.c.b16 %v250, %v250
      %v254 = vsel %vm216, %v251, 0
      %v257 = vsel %vm216, %v252, 0
      %v260 = vsel %vm223, %v202, 0
      %262 = vmatpush.bf16.msra.mxu0 0
      %263 = vmatpush.bf16.msra.mxu0 0
      %264 = vmatpush.bf16.msra.mxu0 0
      %265 = vmatpush.bf16.msra.mxu0 0
      %266 = vmatpush.bf16.msra.mxu0 0
      %267 = vmatpush.bf16.msra.mxu0 0
      %268 = vmatpush.bf16.msra.mxu0 0
      %269 = vmatpush.bf16.msra.mxu0 %v260
      %270 = vmatmul.bf16.gmra.mxu0 %v254
      %v271 = vpop.f32.mrf.mxu0
      %v272 = vadd.f32 %v237, %v271
      %v273 = vpop.f32.mrf.mxu0
      %v274 = vadd.f32 %v239, %v273
      %275 = vmatmul.bf16.gmra.mxu0 %v257
      %v276 = vpop.f32.mrf.mxu0
      %v277 = vadd.f32 %v242, %v276
      %v278 = vpop.f32.mrf.mxu0
      %279 = vdwg.mxu0
      %v280 = vld [vmem:[%s192 + $0x8] sm:$0x7]
      %s281 = scalar_lea.vmem %s1, 8
      %v282 = vld [vmem:[%s281] sm:$0xf]
      %v284 = vunpack.c.l.b16 %v280
      %v285 = vpack.c.b16 %v284, %v284
      %vm286 = vsmask.f32 7424
      %v287 = vshrl.u32 %v251, 16
      %v289 = vshll.u32 %v251, 16
      %v291 = vrot.slane %v289, 1
      %v292 = vor.u32 %v287, %v291
      %v294 = vshll.u32 %v285, 16
      %v296 = vrot.slane %v294, 1
      %v297 = vsel %vm286, %v292, %v296
      %v298 = vshrl.u32 %v285, 16
      %v300 = vor.u32 %v298, %v296
      %v302 = vsel %vm216, %v297, 0
      %v305 = vsel %vm216, %v300, 0
      %v308 = vsel %vm223, %v282, 0
      %310 = vmatpush.bf16.msra.mxu0 0
      %311 = vmatpush.bf16.msra.mxu0 0
      %312 = vmatpush.bf16.msra.mxu0 0
      %313 = vmatpush.bf16.msra.mxu0 0
      %314 = vmatpush.bf16.msra.mxu0 0
      %315 = vmatpush.bf16.msra.mxu0 0
      %316 = vmatpush.bf16.msra.mxu0 0
      %317 = vmatpush.bf16.msra.mxu0 %v308
      %318 = vmatmul.bf16.gmra.mxu0 %v302
      %v319 = vpop.f32.mrf.mxu0
      %v320 = vadd.f32 0.0, %v319
      %v321 = vpop.f32.mrf.mxu0
      %v322 = vadd.f32 0.0, %v321
      %323 = vmatmul.bf16.gmra.mxu0 %v305
      %v324 = vpop.f32.mrf.mxu0
      %v325 = vadd.f32 0.0, %v324
      %v326 = vpop.f32.mrf.mxu0
      %327 = vdwg.mxu0
      %v328 = vadd.f32 %v272, %v320
      %v329 = vadd.f32 %v274, %v322
      %v330 = vadd.f32 %v277, %v325
      %v331 = vld [vmem:[%s192 + $0x20] sm:$0xf]
      %v332 = vld [vmem:[%s192 + $0x24] sm:$0xf]
      %v333 = vld [vmem:[%s192 + $0x28] sm:$0x3]
      %s334 = scalar_lea.vmem %s1, 12
      %v335 = vld [vmem:[%s334] sm:$0xf]
      %v339 = vunpack.c.l.b16 %v331
      %v340 = vunpack.c.l.b16 %v332
      %v341 = vunpack.c.l.b16 %v333
      %v342 = vpack.c.b16 %v340, %v339
      %v343 = vpack.c.b16 %v341, %v341
      %v345 = vsel %vm216, %v342, 0
      %v348 = vsel %vm216, %v343, 0
      %v351 = vsel %vm223, %v335, 0
      %353 = vmatpush.bf16.msra.mxu0 0
      %354 = vmatpush.bf16.msra.mxu0 0
      %355 = vmatpush.bf16.msra.mxu0 0
      %356 = vmatpush.bf16.msra.mxu0 0
      %357 = vmatpush.bf16.msra.mxu0 0
      %358 = vmatpush.bf16.msra.mxu0 0
      %359 = vmatpush.bf16.msra.mxu0 0
      %360 = vmatpush.bf16.msra.mxu0 %v351
      %361 = vmatmul.bf16.gmra.mxu0 %v345
      %v362 = vpop.f32.mrf.mxu0
      %v363 = vadd.f32 0.0, %v362
      %v364 = vpop.f32.mrf.mxu0
      %v365 = vadd.f32 0.0, %v364
      %366 = vmatmul.bf16.gmra.mxu0 %v348
      %v367 = vpop.f32.mrf.mxu0
      %v368 = vadd.f32 0.0, %v367
      %v369 = vpop.f32.mrf.mxu0
      %370 = vdwg.mxu0
      %v371 = vadd.f32 %v328, %v363
      %v372 = vadd.f32 %v329, %v365
      %v373 = vadd.f32 %v330, %v368
      %v374 = vld [vmem:[%s192 + $0x30] sm:$0xf]
      %v375 = vld [vmem:[%s192 + $0x34] sm:$0xf]
      %v376 = vld [vmem:[%s192 + $0x38] sm:$0x3]
      %s377 = scalar_lea.vmem %s1, 16
      %v378 = vld [vmem:[%s377] sm:$0xf]
      %v382 = vunpack.c.l.b16 %v374
      %v383 = vunpack.c.l.b16 %v375
      %v384 = vunpack.c.l.b16 %v376
      %v385 = vpack.c.b16 %v383, %v382
      %v386 = vpack.c.b16 %v384, %v384
      %v388 = vsel %vm216, %v385, 0
      %v391 = vsel %vm216, %v386, 0
      %v394 = vsel %vm223, %v378, 0
      %396 = vmatpush.bf16.msra.mxu0 0
      %397 = vmatpush.bf16.msra.mxu0 0
      %398 = vmatpush.bf16.msra.mxu0 0
      %399 = vmatpush.bf16.msra.mxu0 0
      %400 = vmatpush.bf16.msra.mxu0 0
      %401 = vmatpush.bf16.msra.mxu0 0
      %402 = vmatpush.bf16.msra.mxu0 0
      %403 = vmatpush.bf16.msra.mxu0 %v394
      %404 = vmatmul.bf16.gmra.mxu0 %v388
      %v405 = vpop.f32.mrf.mxu0
      %v406 = vadd.f32 0.0, %v405
      %v407 = vpop.f32.mrf.mxu0
      %v408 = vadd.f32 0.0, %v407
      %409 = vmatmul.bf16.gmra.mxu0 %v391
      %v410 = vpop.f32.mrf.mxu0
      %v411 = vadd.f32 0.0, %v410
      %v412 = vpop.f32.mrf.mxu0
      %413 = vdwg.mxu0
      %v414 = vadd.f32 %v371, %v406
      %v415 = vadd.f32 %v372, %v408
      %v416 = vadd.f32 %v373, %v411
      %v417 = vld [vmem:[%s192 + $0x28] sm:$0x7]
      %s418 = scalar_lea.vmem %s1, 20
      %v419 = vld [vmem:[%s418] sm:$0xf]
      %v421 = vunpack.c.l.b16 %v417
      %v422 = vpack.c.b16 %v421, %v421
      %v423 = vshrl.u32 %v342, 16
      %v425 = vshll.u32 %v342, 16
      %v427 = vrot.slane %v425, 1
      %v428 = vor.u32 %v423, %v427
      %v430 = vshll.u32 %v422, 16
      %v432 = vrot.slane %v430, 1
      %v433 = vsel %vm286, %v428, %v432
      %v434 = vshrl.u32 %v422, 16
      %v436 = vor.u32 %v434, %v432
      %v438 = vsel %vm216, %v433, 0
      %v441 = vsel %vm216, %v436, 0
      %v444 = vsel %vm223, %v419, 0
      %446 = vmatpush.bf16.msra.mxu0 0
      %447 = vmatpush.bf16.msra.mxu0 0
      %448 = vmatpush.bf16.msra.mxu0 0
      %449 = vmatpush.bf16.msra.mxu0 0
      %450 = vmatpush.bf16.msra.mxu0 0
      %451 = vmatpush.bf16.msra.mxu0 0
      %452 = vmatpush.bf16.msra.mxu0 0
      %453 = vmatpush.bf16.msra.mxu0 %v444
      %454 = vmatmul.bf16.gmra.mxu0 %v438
      %v455 = vpop.f32.mrf.mxu0
      %v456 = vadd.f32 0.0, %v455
      %v457 = vpop.f32.mrf.mxu0
      %v458 = vadd.f32 0.0, %v457
      %459 = vmatmul.bf16.gmra.mxu0 %v441
      %v460 = vpop.f32.mrf.mxu0
      %v461 = vadd.f32 0.0, %v460
      %v462 = vpop.f32.mrf.mxu0
      %463 = vdwg.mxu0
      %v464 = vadd.f32 %v414, %v456
      %v465 = vadd.f32 %v415, %v458
      %v466 = vadd.f32 %v416, %v461
      %v467 = vld [vmem:[%s192] sm:$0xc]
      %v468 = vld [vmem:[%s192 + $0x4] sm:$0xf]
      %v469 = vld [vmem:[%s192 + $0x8] sm:$0xf]
      %v470 = vld [vmem:[%s192 + $0xc] sm:$0x1]
      %s471 = scalar_lea.vmem %s1, 24
      %v472 = vld [vmem:[%s471] sm:$0xf]
      %v477 = vunpack.c.l.b16 %v467
      %v478 = vunpack.c.l.b16 %v468
      %v479 = vunpack.c.l.b16 %v469
      %v480 = vunpack.c.l.b16 %v470
      %v481 = vpack.c.b16 %v478, %v477
      %v482 = vpack.c.b16 %v480, %v479
      %vm483 = vsmask.f32 5376
      %v485 = vshrl.u32 %v481, 16
      %v487 = vrot.slane %v485, 2
      %v488 = vshll.u32 %v481, 16
      %v490 = vrot.slane %v488, 3
      %v491 = vor.u32 %v487, %v490
      %v493 = vshrl.u32 %v482, 16
      %v495 = vrot.slane %v493, 2
      %v496 = vshll.u32 %v482, 16
      %v498 = vrot.slane %v496, 3
      %v499 = vor.u32 %v495, %v498
      %v500 = vsel %vm483, %v491, %v499
      %v502 = vsel %vm216, %v500, 0
      %v505 = vsel %vm216, %v499, 0
      %v508 = vsel %vm223, %v472, 0
      %510 = vmatpush.bf16.msra.mxu0 0
      %511 = vmatpush.bf16.msra.mxu0 0
      %512 = vmatpush.bf16.msra.mxu0 0
      %513 = vmatpush.bf16.msra.mxu0 0
      %514 = vmatpush.bf16.msra.mxu0 0
      %515 = vmatpush.bf16.msra.mxu0 0
      %516 = vmatpush.bf16.msra.mxu0 0
      %517 = vmatpush.bf16.msra.mxu0 %v508
      %518 = vmatmul.bf16.gmra.mxu0 %v502
      %v519 = vpop.f32.mrf.mxu0
      %v520 = vadd.f32 0.0, %v519
      %v521 = vpop.f32.mrf.mxu0
      %v522 = vadd.f32 0.0, %v521
      %523 = vmatmul.bf16.gmra.mxu0 %v505
      %v524 = vpop.f32.mrf.mxu0
      %v525 = vadd.f32 0.0, %v524
      %v526 = vpop.f32.mrf.mxu0
      %527 = vdwg.mxu0
      %v528 = vadd.f32 %v464, %v520
      %v529 = vadd.f32 %v465, %v522
      %v530 = vadd.f32 %v466, %v525
      %v531 = vld [vmem:[%s192 + $0x10] sm:$0xc]
      %v532 = vld [vmem:[%s192 + $0x14] sm:$0xf]
      %v533 = vld [vmem:[%s192 + $0x18] sm:$0xf]
      %v534 = vld [vmem:[%s192 + $0x1c] sm:$0x1]
      %s535 = scalar_lea.vmem %s1, 28
      %v536 = vld [vmem:[%s535] sm:$0xf]
      %v541 = vunpack.c.l.b16 %v531
      %v542 = vunpack.c.l.b16 %v532
      %v543 = vunpack.c.l.b16 %v533
      %v544 = vunpack.c.l.b16 %v534
      %v545 = vpack.c.b16 %v542, %v541
      %v546 = vpack.c.b16 %v544, %v543
      %v548 = vshrl.u32 %v545, 16
      %v550 = vrot.slane %v548, 2
      %v551 = vshll.u32 %v545, 16
      %v553 = vrot.slane %v551, 3
      %v554 = vor.u32 %v550, %v553
      %v556 = vshrl.u32 %v546, 16
      %v558 = vrot.slane %v556, 2
      %v559 = vshll.u32 %v546, 16
      %v561 = vrot.slane %v559, 3
      %v562 = vor.u32 %v558, %v561
      %v563 = vsel %vm483, %v554, %v562
      %v565 = vsel %vm216, %v563, 0
      %v568 = vsel %vm216, %v562, 0
      %v571 = vsel %vm223, %v536, 0
      %573 = vmatpush.bf16.msra.mxu0 0
      %574 = vmatpush.bf16.msra.mxu0 0
      %575 = vmatpush.bf16.msra.mxu0 0
      %576 = vmatpush.bf16.msra.mxu0 0
      %577 = vmatpush.bf16.msra.mxu0 0
      %578 = vmatpush.bf16.msra.mxu0 0
      %579 = vmatpush.bf16.msra.mxu0 0
      %580 = vmatpush.bf16.msra.mxu0 %v571
      %581 = vmatmul.bf16.gmra.mxu0 %v565
      %v582 = vpop.f32.mrf.mxu0
      %v583 = vadd.f32 0.0, %v582
      %v584 = vpop.f32.mrf.mxu0
      %v585 = vadd.f32 0.0, %v584
      %586 = vmatmul.bf16.gmra.mxu0 %v568
      %v587 = vpop.f32.mrf.mxu0
      %v588 = vadd.f32 0.0, %v587
      %v589 = vpop.f32.mrf.mxu0
      %590 = vdwg.mxu0
      %v591 = vadd.f32 %v528, %v583
      %v592 = vadd.f32 %v529, %v585
      %v593 = vadd.f32 %v530, %v588
      %v594 = vld [vmem:[%s192] sm:$0x8]
      %s595 = scalar_lea.vmem %s1, 32
      %v596 = vld [vmem:[%s595] sm:$0xf]
      %v598 = vunpack.c.l.b16 %v594
      %v599 = vpack.c.b16 %v478, %v598
      %vm600 = vcmask 1044480
      %v601 = vrot.slane %v599, 3
      %v602 = vrot.slane %v482, 3
      %v603 = vsel %vm600, %v601, %v602
      %v605 = vsel %vm216, %v603, 0
      %v608 = vsel %vm216, %v602, 0
      %v611 = vsel %vm223, %v596, 0
      %613 = vmatpush.bf16.msra.mxu0 0
      %614 = vmatpush.bf16.msra.mxu0 0
      %615 = vmatpush.bf16.msra.mxu0 0
      %616 = vmatpush.bf16.msra.mxu0 0
      %617 = vmatpush.bf16.msra.mxu0 0
      %618 = vmatpush.bf16.msra.mxu0 0
      %619 = vmatpush.bf16.msra.mxu0 0
      %620 = vmatpush.bf16.msra.mxu0 %v611
      %621 = vmatmul.bf16.gmra.mxu0 %v605
      %v622 = vpop.f32.mrf.mxu0
      %v623 = vadd.f32 0.0, %v622
      %v624 = vpop.f32.mrf.mxu0
      %v625 = vadd.f32 0.0, %v624
      %626 = vmatmul.bf16.gmra.mxu0 %v608
      %v627 = vpop.f32.mrf.mxu0
      %v628 = vadd.f32 0.0, %v627
      %v629 = vpop.f32.mrf.mxu0
      %630 = vdwg.mxu0
      %v631 = vadd.f32 %v591, %v623
      %v632 = vadd.f32 %v592, %v625
      %v633 = vadd.f32 %v593, %v628
      %v634 = vlaneseq
      %v635 = vand.u32 %v634, 127
      %vm636 = vcmp.lt.s32.totalorder %v635, 0
      %v637 = vsub.s32 0, %v635
      %v638 = vsel %vm636, %v637, %v635
      %v639 = vand.u32 %v638, 65535
      %v640 = vshrl.u32 %v638, 16
      %v642 = vmul.u32 %v639, 52429
      %v643 = vmul.u32 %v639, 52428
      %v644 = vmul.u32 %v640, 52429
      %v645 = vmul.u32 %v640, 52428
      %v646 = vshll.u32 %v643, 16
      %v647 = vshrl.u32 %v643, 16
      %v648 = vshll.u32 %v644, 16
      %v649 = vshrl.u32 %v644, 16
      %vm650 = vc.u32 %v642, %v646
      %v651 = vsel %vm650, 1, 0
      %v652 = vadd.s32 %v642, %v646
      %v653 = vadd.s32 %v645, %v651
      %vm654 = vc.u32 %v652, %v648
      %v655 = vsel %vm654, 1, 0
      %v656 = vadd.s32 %v652, %v648
      %v657 = vadd.s32 %v653, %v655
      %v658 = vadd.s32 %v657, %v647
      %v659 = vadd.s32 %v658, %v649
      %v660 = vshrl.u32 %v659, 2
      %v661 = vmul.u32 %v660, 5
      %v662 = vsub.s32 %v638, %v661
      %v663 = vsub.s32 0, %v662
      %v664 = vsel %vm636, %v663, %v662
      %vm665 = vcmp.ne.s32.totalorder %v664, 0
      %vm666 = vcmp.lt.s32.totalorder %v664, 0
      %vm667 = vmand %vm666, %vm665
      %v668 = vadd.s32 %v664, 5
      %v669 = vsel %vm667, %v668, %v664
      %vm670 = vcmp.lt.s32.totalorder %v669, 4
      %v671 = vsel %vm670, 1, 0
      %v672 = vcvt.s32.f32 %v671
      %vm673 = vcmask 162816
      %v675 = vsel %vm673, %v672, 0
      %v678 = vsel %vm223, %v633, 0
      %680 = vmatpush.msra.mxu0 0.0
      %681 = vmatpush.msra.mxu0 0.0
      %682 = vmatpush.msra.mxu0 0.0
      %683 = vmatpush.msra.mxu0 0.0
      %684 = vmatpush.msra.mxu0 0.0
      %685 = vmatpush.msra.mxu0 0.0
      %686 = vmatpush.msra.mxu0 0.0
      %687 = vmatpush.msra.mxu0 0.0
      %688 = vmatpush.msra.mxu0 0.0
      %689 = vmatpush.msra.mxu0 0.0
      %690 = vmatpush.msra.mxu0 0.0
      %691 = vmatpush.msra.mxu0 0.0
      %692 = vmatpush.msra.mxu0 0.0
      %693 = vmatpush.msra.mxu0 %v678
      %694 = vmatpush.msra.mxu0 %v632
      %695 = vmatpush.msra.mxu0 %v631
      %696 = vmatmul.f32.gmra.mxu0 %v675
      %v697 = vpop.f32.mrf.mxu0
      %v698 = vadd.f32 0.0, %v697
      %699 = vdwg.mxu0
      %v700 = vmul.f32 %v698, 0.0625
      %v701 = vmul.f32 %v631, %v631
      %v702 = vmul.f32 %v632, %v632
      %v703 = vmul.f32 %v633, %v633
      %v705 = vsel %vm223, %v703, 0
      %707 = vmatpush.msra.mxu0 0.0
      %708 = vmatpush.msra.mxu0 0.0
      %709 = vmatpush.msra.mxu0 0.0
      %710 = vmatpush.msra.mxu0 0.0
      %711 = vmatpush.msra.mxu0 0.0
      %712 = vmatpush.msra.mxu0 0.0
      %713 = vmatpush.msra.mxu0 0.0
      %714 = vmatpush.msra.mxu0 0.0
      %715 = vmatpush.msra.mxu0 0.0
      %716 = vmatpush.msra.mxu0 0.0
      %717 = vmatpush.msra.mxu0 0.0
      %718 = vmatpush.msra.mxu0 0.0
      %719 = vmatpush.msra.mxu0 0.0
      %720 = vmatpush.msra.mxu0 %v705
      %721 = vmatpush.msra.mxu0 %v702
      %722 = vmatpush.msra.mxu0 %v701
      %723 = vmatmul.f32.gmra.mxu0 %v675
      %v724 = vpop.f32.mrf.mxu0
      %v725 = vadd.f32 0.0, %v724
      %726 = vdwg.mxu0
      %v727 = vmul.f32 %v725, 0.0625
      %v728 = vmul.f32 %v700, %v700
      %v729 = vsub.f32 %v727, %v728
      %v730 = vmax.f32 %v729, 0.0
      %v731 = vld [vmem:[%s2] sm:$0x1]
      %v732 = vadd.f32 %v730, 1e-05
      %v733 = vrsqrt.pop %v732
      %v734 = vmul.f32 %v733, %v732
      %v735 = vmul.f32 %v734, %v733
      %v736 = vmul.f32 0.5, %v735
      %v737 = vsub.f32 1.5, %v736
      %v738 = vmul.f32 %v733, %v737
      %vm739 = vweird.f32 %v732
      %vm740 = vweird.f32 %v733
      %vm741 = vmor %vm739, %vm740
      %v742 = vsel %vm741, %v733, %v738
      %v743 = vmul.f32 %v731, %v742
      %v744 = vld [vmem:[%s3] sm:$0x1]
      %v745 = vmul.f32 %v700, %v743
      %v746 = vsub.f32 %v744, %v745
      %v748 = vperm.slane %v743, 0
      %v750 = vmul.f32 %v631, %v748
      %v751 = vmul.f32 %v632, %v748
      %v752 = vmul.f32 %v633, %v748
      %v754 = vperm.slane %v746, 0
      %v756 = vadd.f32 %v750, %v754
      %v757 = vadd.f32 %v751, %v754
      %v758 = vadd.f32 %v752, %v754
      %v759 = vmax.f32 %v756, 0.0
      %v760 = vmax.f32 %v757, 0.0
      %v761 = vmax.f32 %v758, 0.0
      %v762 = vpack.c.bf16 %v759, %v759
      %v763 = vpack.c.bf16 %v760, %v760
      %v764 = vpack.c.bf16 %v761, %v761
      %765 = vst [vmem:[%s197] sm:$0xf] %v762
      %766 = vst [vmem:[%s197 + $0x4] sm:$0xf] %v763
      %767 = vst [vmem:[%s197 + $0x8] sm:$0x3] %v764
      %p768 = scmp.lt.s32.totalorder %s15, 1
      %s769 = scalar_select %p768, %s15, 1
      %s770 = smul.addr %s769, 3
      %s771 = smul.addr %s770, 4
      %s772 = scalar_lea.vmem %s4, %s771
      // Predicated region
      $region37: #{forward.4} parent=35 // pred_check
        %p773 = pneg %p122
      $region38: #{forward.4} parent=35 // pred_check_branch
        %775 = sbr.rel (%p773) target = $region40
      $region39: #{forward.4} parent=35 // pred_region
        _
      $region40: #{forward.4} parent=35 // pred_fallthru
        _
    $region36: #{forward.4} parent=5 // pred_fallthru
      _
    %p776 = scmp.le.s32.totalorder 2, %s10
    // Predicated region
    $region41: #{forward.4} parent=5 // pred_check
      %p777 = pneg %p776
    $region42: #{forward.4} parent=5 // pred_check_branch
      %779 = sbr.rel (%p777) target = $region44
    $region43: #{forward.4} parent=5 // pred_region
      %s780 = ssub.s32 %s10, 2
      // Predicated region
      $region45: #{forward.4} parent=43 // pred_check
        %p781 = pneg %p128
      $region46: #{forward.4} parent=43 // pred_check_branch
        %783 = sbr.rel (%p781) target = $region48
      $region47: #{forward.4} parent=43 // pred_region
        %p784 = scmp.lt.s32.totalorder %s16, 1
        %s785 = scalar_select %p784, %s16, 1
        %s786 = smul.addr %s785, 3
        %s787 = smul.addr %s786, 4
        %s788 = scalar_lea.vmem %s4, %s787
      $region48: #{forward.4} parent=43 // pred_fallthru
        _
    $region44: #{forward.4} parent=5 // pred_fallthru
      _
  $region6: #{forward.4} parent=0 // loop_footer
    %s14 = sadd.s32 1, %s10
  $region7: #{forward.4} parent=0 // loop_footer_branch
    %9 = sbr.rel target = $region3
  $region8: #{forward.4} parent=0 // loop_exit
    _

// kernel: forward.3
$region0: #{forward.3}
  #allocation0 [shape = 'u32[]', space=smem, size = 0x4, offset = 0x4, fixed_abs, tag = 'smem constant byte address 0x4 - core index']
  #allocation1 [shape = 'u32[72,128]{1,0:T(1,128)}', space=vmem, size = 0x9000, scoped, tag = 'internal scratch']
  %s0 = inlined_call_operand.vmem [shape: bf16[2,352,8], index: 0, kind: input, shape index: {}]
  %s1 = inlined_call_operand.vmem [shape: bf16[9,8,128], index: 1, kind: input, shape index: {}]
  %s2 = inlined_call_operand.vmem [shape: f32[1,128], index: 2, kind: input, shape index: {}]
  %s3 = inlined_call_operand.vmem [shape: f32[1,128], index: 3, kind: input, shape index: {}]
  %s4 = inlined_call_operand.vmem [shape: bf16[2,72,128], index: 4, kind: output, shape index: {}]
  %s5 = sld [smem:[#allocation0]]
  $region49: #{forward.3} parent=0
    _
  %s7 = ssub.s32 1, %s5
  %s8 = scalar_select 0, %s7, %s5
  loop: start=0, step=1, limit=4
  $region2: #{forward.3} parent=0 // loop_pre_header
    _
  $region3: #{forward.3} parent=0 // loop_header
    %s10 = sphi 0, %s14
    %p11 = scmp.ge.s32.totalorder %s10, 4
    %s20 = sphi 0, %s22
    %s23 = sphi 0, %s20
    %s24 = sphi 0, %s23
    %s40 = sphi 0, %s24
    %s44 = sphi 0, %s44
    %s46 = sphi 0, %s44
    %s47 = sphi 0, %s46
    %s61 = sphi 0, %s47
    %s65 = sphi 0, %s65
    %s67 = sphi 0, %s65
    %s68 = sphi 0, %s67
    %s82 = sphi 0, %s68
    %s86 = sphi 0, %s86
    %s88 = sphi 0, %s86
    %s89 = sphi 0, %s88
    %s103 = sphi 0, %s89
    %s109 = sphi 0, %s111
    %s112 = sphi 0, %s109
    %s113 = sphi 0, %s112
    %s129 = sphi 0, %s113
  $region4: #{forward.3} parent=0 // loop_header_branch
    %13 = sbr.rel (%p11) target = $region8
  $region5: #{forward.3} parent=0 // loop_body
    %s15 = ssub.s32 %s10, 1
    %s16 = ssub.s32 %s10, 2
    %s17 = sadd.s32 %s10, 1
    %s18 = ssub.s32 %s10, %s17
    %p19 = scmp.eq.s32.totalorder %s18, 0
    %s21 = sadd.s32 %s20, 1
    %s22 = scalar_select %p19, %s20, %s21
    %p25 = pneg %p19
    %p26 = scmp.eq.s32.totalorder %s10, 1
    %p27 = por %p25, %p26
    %p28 = scmp.ne.s32.totalorder %s20, %s23
    %p29 = scmp.eq.s32.totalorder %s10, 0
    %p30 = por %p28, %p29
    %p31 = scmp.ne.s32.totalorder %s20, %s23
    %p32 = scmp.eq.s32.totalorder %s15, 1
    %p33 = por %p31, %p32
    %p34 = scmp.ne.s32.totalorder %s23, %s24
    %p35 = scmp.eq.s32.totalorder %s15, 0
    %p36 = por %p34, %p35
    %p37 = scmp.ne.s32.totalorder %s23, %s24
    %p38 = scmp.eq.s32.totalorder %s16, 1
    %p39 = por %p37, %p38
    %p41 = scmp.ne.s32.totalorder %s24, %s40
    %p42 = scmp.eq.s32.totalorder %s16, 0
    %p43 = por %p41, %p42
    %s45 = sadd.s32 %s44, 1
    %p48 = scmp.eq.s32.totalorder %s10, 1
    %p49 = scmp.ne.s32.totalorder %s44, %s46
    %p50 = scmp.eq.s32.totalorder %s10, 0
    %p51 = por %p49, %p50
    %p52 = scmp.ne.s32.totalorder %s44, %s46
    %p53 = scmp.eq.s32.totalorder %s15, 1
    %p54 = por %p52, %p53
    %p55 = scmp.ne.s32.totalorder %s46, %s47
    %p56 = scmp.eq.s32.totalorder %s15, 0
    %p57 = por %p55, %p56
    %p58 = scmp.ne.s32.totalorder %s46, %s47
    %p59 = scmp.eq.s32.totalorder %s16, 1
    %p60 = por %p58, %p59
    %p62 = scmp.ne.s32.totalorder %s47, %s61
    %p63 = scmp.eq.s32.totalorder %s16, 0
    %p64 = por %p62, %p63
    %s66 = sadd.s32 %s65, 1
    %p69 = scmp.eq.s32.totalorder %s10, 1
    %p70 = scmp.ne.s32.totalorder %s65, %s67
    %p71 = scmp.eq.s32.totalorder %s10, 0
    %p72 = por %p70, %p71
    %p73 = scmp.ne.s32.totalorder %s65, %s67
    %p74 = scmp.eq.s32.totalorder %s15, 1
    %p75 = por %p73, %p74
    %p76 = scmp.ne.s32.totalorder %s67, %s68
    %p77 = scmp.eq.s32.totalorder %s15, 0
    %p78 = por %p76, %p77
    %p79 = scmp.ne.s32.totalorder %s67, %s68
    %p80 = scmp.eq.s32.totalorder %s16, 1
    %p81 = por %p79, %p80
    %p83 = scmp.ne.s32.totalorder %s68, %s82
    %p84 = scmp.eq.s32.totalorder %s16, 0
    %p85 = por %p83, %p84
    %s87 = sadd.s32 %s86, 1
    %p90 = scmp.eq.s32.totalorder %s10, 1
    %p91 = scmp.ne.s32.totalorder %s86, %s88
    %p92 = scmp.eq.s32.totalorder %s10, 0
    %p93 = por %p91, %p92
    %p94 = scmp.ne.s32.totalorder %s86, %s88
    %p95 = scmp.eq.s32.totalorder %s15, 1
    %p96 = por %p94, %p95
    %p97 = scmp.ne.s32.totalorder %s88, %s89
    %p98 = scmp.eq.s32.totalorder %s15, 0
    %p99 = por %p97, %p98
    %p100 = scmp.ne.s32.totalorder %s88, %s89
    %p101 = scmp.eq.s32.totalorder %s16, 1
    %p102 = por %p100, %p101
    %p104 = scmp.ne.s32.totalorder %s89, %s103
    %p105 = scmp.eq.s32.totalorder %s16, 0
    %p106 = por %p104, %p105
    %s107 = ssub.s32 %s10, %s17
    %p108 = scmp.eq.s32.totalorder %s107, 0
    %s110 = sadd.s32 %s109, 1
    %s111 = scalar_select %p108, %s109, %s110
    %p114 = pneg %p108
    %p115 = scmp.eq.s32.totalorder %s10, 1
    %p116 = por %p114, %p115
    %p117 = scmp.ne.s32.totalorder %s109, %s112
    %p118 = scmp.eq.s32.totalorder %s10, 0
    %p119 = por %p117, %p118
    %p120 = scmp.ne.s32.totalorder %s109, %s112
    %p121 = scmp.eq.s32.totalorder %s15, 1
    %p122 = por %p120, %p121
    %p123 = scmp.ne.s32.totalorder %s112, %s113
    %p124 = scmp.eq.s32.totalorder %s15, 0
    %p125 = por %p123, %p124
    %p126 = scmp.ne.s32.totalorder %s112, %s113
    %p127 = scmp.eq.s32.totalorder %s16, 1
    %p128 = por %p126, %p127
    %p130 = scmp.ne.s32.totalorder %s113, %s129
    %p131 = scmp.eq.s32.totalorder %s16, 0
    %p132 = por %p130, %p131
    %p133 = scmp.le.s32.totalorder 1, %s10
    %p134 = scmp.lt.s32.totalorder %s10, 3
    %p135 = pnand %p133, %p134
    %p136 = pneg %p135
    // Predicated region
    $region9: #{forward.3} parent=5 // pred_check
      _
    $region10: #{forward.3} parent=5 // pred_check_branch
      %138 = sbr.rel (%p135) target = $region12
    $region11: #{forward.3} parent=5 // pred_region
      %s139 = ssub.s32 %s10, 1
      // Predicated region
      $region13: #{forward.3} parent=11 // pred_check
        %p140 = pneg %p57
      $region14: #{forward.3} parent=11 // pred_check_branch
        %142 = sbr.rel (%p140) target = $region16
      $region15: #{forward.3} parent=11 // pred_region
        _
      $region16: #{forward.3} parent=11 // pred_fallthru
        _
      // Predicated region
      $region17: #{forward.3} parent=11 // pred_check
        %p143 = pneg %p78
      $region18: #{forward.3} parent=11 // pred_check_branch
        %145 = sbr.rel (%p143) target = $region20
      $region19: #{forward.3} parent=11 // pred_region
        _
      $region20: #{forward.3} parent=11 // pred_fallthru
        _
      // Predicated region
      $region21: #{forward.3} parent=11 // pred_check
        %p146 = pneg %p99
      $region22: #{forward.3} parent=11 // pred_check_branch
        %148 = sbr.rel (%p146) target = $region24
      $region23: #{forward.3} parent=11 // pred_region
        _
      $region24: #{forward.3} parent=11 // pred_fallthru
        _
    $region12: #{forward.3} parent=5 // pred_fallthru
      _
    %p149 = scmp.lt.s32.totalorder %s10, 2
    // Predicated region
    $region25: #{forward.3} parent=5 // pred_check
      %p150 = pneg %p149
    $region26: #{forward.3} parent=5 // pred_check_branch
      %152 = sbr.rel (%p150) target = $region28
    $region27: #{forward.3} parent=5 // pred_region
      // Predicated region
      $region29: #{forward.3} parent=27 // pred_check
        %p153 = pneg %p30
      $region30: #{forward.3} parent=27 // pred_check_branch
        %155 = sbr.rel (%p153) target = $region32
      $region31: #{forward.3} parent=27 // pred_region
        %p156 = scmp.lt.s32.totalorder %s10, 1
        %s157 = scalar_select %p156, %s10, 1
        %s158 = smul.addr %s157, 44
        %s159 = smul.addr %s158, 4
        %s160 = scalar_lea.vmem %s0, %s159
      $region32: #{forward.3} parent=27 // pred_fallthru
        _
    $region28: #{forward.3} parent=5 // pred_fallthru
      _
    %p161 = scmp.le.s32.totalorder 1, %s10
    %p162 = scmp.lt.s32.totalorder %s10, 3
    %p163 = pnand %p161, %p162
    %p164 = pneg %p163
    // Predicated region
    $region33: #{forward.3} parent=5 // pred_check
      _
    $region34: #{forward.3} parent=5 // pred_check_branch
      %166 = sbr.rel (%p163) target = $region36
    $region35: #{forward.3} parent=5 // pred_region
      %s167 = ssub.s32 %s10, 1
      %p168 = scmp.lt.s32.totalorder %s15, 1
      %s169 = scalar_select %p168, %s15, 1
      %s170 = smul.addr %s169, 44
      %s171 = smul.addr %s170, 4
      %s172 = scalar_lea.vmem %s0, %s171
      %p173 = pneg %p36
      %p174 = pneg %p33
      %p175 = pneg %p57
      %p176 = pneg %p54
      %p177 = pneg %p78
      %p178 = pneg %p75
      %p179 = pneg %p99
      %p180 = pneg %p96
      %p181 = pneg %p125
      %p182 = pneg %p122
      %p183 = scmp.lt.s32.totalorder %s15, 1
      %s184 = scalar_select %p183, %s15, 1
      %s185 = smul.addr %s184, 9
      %s186 = smul.addr %s185, 4
      %s187 = scalar_lea.vmem %s4, %s186
      %p188 = scmp.lt.s32.totalorder %s15, 1
      %s189 = scalar_select %p188, %s15, 1
      %s190 = smul.addr %s189, 44
      %s191 = smul.addr %s190, 4
      %s192 = scalar_lea.vmem %s0, %s191
      %p193 = scmp.lt.s32.totalorder %s15, 1
      %s194 = scalar_select %p193, %s15, 1
      %s195 = smul.addr %s194, 9
      %s196 = smul.addr %s195, 4
      %s197 = scalar_lea.vmem %s4, %s196
      %v199 = vld [vmem:[%s192] sm:$0xf]
      %v200 = vld [vmem:[%s192 + $0x4] sm:$0xf]
      %v201 = vld [vmem:[%s192 + $0x8] sm:$0xf]
      %v202 = vld [vmem:[%s192 + $0xc] sm:$0xf]
      %v203 = vld [vmem:[%s192 + $0x10] sm:$0xf]
      %v204 = vld [vmem:[%s192 + $0x14] sm:$0xf]
      %v205 = vld [vmem:[%s192 + $0x18] sm:$0xf]
      %v206 = vld [vmem:[%s192 + $0x1c] sm:$0xf]
      %v207 = vld [vmem:[%s192 + $0x20] sm:$0xf]
      %v208 = vld [vmem:[%s1] sm:$0xf]
      %v209 = vld [vmem:[%s192 + $0x2c] sm:$0xf]
      %v210 = vld [vmem:[%s192 + $0x30] sm:$0xf]
      %v211 = vld [vmem:[%s192 + $0x34] sm:$0xf]
      %v212 = vld [vmem:[%s192 + $0x38] sm:$0xf]
      %v213 = vld [vmem:[%s192 + $0x3c] sm:$0xf]
      %v214 = vld [vmem:[%s192 + $0x40] sm:$0xf]
      %v215 = vld [vmem:[%s192 + $0x44] sm:$0xf]
      %v216 = vld [vmem:[%s192 + $0x48] sm:$0xf]
      %v217 = vld [vmem:[%s192 + $0x4c] sm:$0xf]
      %s218 = scalar_lea.vmem %s1, 4
      %v219 = vld [vmem:[%s218] sm:$0xf]
      %v229 = vunpack.c.l.b16 %v209
      %v230 = vunpack.c.l.b16 %v210
      %v231 = vunpack.c.l.b16 %v211
      %v232 = vunpack.c.l.b16 %v212
      %v233 = vunpack.c.l.b16 %v213
      %v234 = vunpack.c.l.b16 %v214
      %v235 = vunpack.c.l.b16 %v215
      %v236 = vunpack.c.l.b16 %v216
      %v237 = vunpack.c.l.b16 %v217
      %v238 = vpack.c.b16 %v230, %v229
      %v239 = vpack.c.b16 %v232, %v231
      %v240 = vpack.c.b16 %v234, %v233
      %v241 = vpack.c.b16 %v236, %v235
      %v242 = vpack.c.b16 %v237, %v237
      %vm243 = vcmask 64512
      %v245 = vsel %vm243, %v238, 0
      %v248 = vsel %vm243, %v239, 0
      %v251 = vsel %vm243, %v240, 0
      %v254 = vsel %vm243, %v241, 0
      %v257 = vsel %vm243, %v242, 0
      %vm259 = vcmask 1043456
      %v261 = vsel %vm259, %v219, 0
      %263 = vmatpush.bf16.msra.mxu0 0
      %264 = vmatpush.bf16.msra.mxu0 0
      %265 = vmatpush.bf16.msra.mxu0 0
      %266 = vmatpush.bf16.msra.mxu0 0
      %267 = vmatpush.bf16.msra.mxu0 0
      %268 = vmatpush.bf16.msra.mxu0 0
      %269 = vmatpush.bf16.msra.mxu0 0
      %270 = vmatpush.bf16.msra.mxu0 %v261
      %271 = vmatmul.bf16.gmra.mxu0 %v245
      %v272 = vpop.f32.mrf.mxu0
      %v273 = vadd.f32 0.0, %v272
      %v274 = vpop.f32.mrf.mxu0
      %v275 = vadd.f32 0.0, %v274
      %276 = vmatmul.bf16.gmra.mxu0 %v248
      %v277 = vpop.f32.mrf.mxu0
      %v278 = vadd.f32 0.0, %v277
      %v279 = vpop.f32.mrf.mxu0
      %v280 = vadd.f32 0.0, %v279
      %281 = vmatmul.bf16.gmra.mxu0 %v251
      %v282 = vpop.f32.mrf.mxu0
      %v283 = vadd.f32 0.0, %v282
      %v284 = vpop.f32.mrf.mxu0
      %v285 = vadd.f32 0.0, %v284
      %286 = vmatmul.bf16.gmra.mxu0 %v254
      %v287 = vpop.f32.mrf.mxu0
      %v288 = vadd.f32 0.0, %v287
      %v289 = vpop.f32.mrf.mxu0
      %v290 = vadd.f32 0.0, %v289
      %291 = vmatmul.bf16.gmra.mxu0 %v257
      %v292 = vpop.f32.mrf.mxu0
      %v293 = vadd.f32 0.0, %v292
      %v294 = vpop.f32.mrf.mxu0
      %295 = vdwg.mxu0
      %v305 = vunpack.c.l.b16 %v199
      %v306 = vunpack.c.l.b16 %v200
      %v307 = vunpack.c.l.b16 %v201
      %v308 = vunpack.c.l.b16 %v202
      %v309 = vunpack.c.l.b16 %v203
      %v310 = vunpack.c.l.b16 %v204
      %v311 = vunpack.c.l.b16 %v205
      %v312 = vunpack.c.l.b16 %v206
      %v313 = vunpack.c.l.b16 %v207
      %v314 = vpack.c.b16 %v306, %v305
      %v315 = vpack.c.b16 %v308, %v307
      %v316 = vpack.c.b16 %v310, %v309
      %v317 = vpack.c.b16 %v312, %v311
      %v318 = vpack.c.b16 %v313, %v313
      %v320 = vsel %vm243, %v314, 0
      %v323 = vsel %vm243, %v315, 0
      %v326 = vsel %vm243, %v316, 0
      %v329 = vsel %vm243, %v317, 0
      %v332 = vsel %vm243, %v318, 0
      %v335 = vsel %vm259, %v208, 0
      %337 = vmatpush.bf16.msra.mxu0 0
      %338 = vmatpush.bf16.msra.mxu0 0
      %339 = vmatpush.bf16.msra.mxu0 0
      %340 = vmatpush.bf16.msra.mxu0 0
      %341 = vmatpush.bf16.msra.mxu0 0
      %342 = vmatpush.bf16.msra.mxu0 0
      %343 = vmatpush.bf16.msra.mxu0 0
      %344 = vmatpush.bf16.msra.mxu0 %v335
      %345 = vmatmul.bf16.gmra.mxu0 %v320
      %v346 = vpop.f32.mrf.mxu0
      %v347 = vadd.f32 %v273, %v346
      %v348 = vpop.f32.mrf.mxu0
      %v349 = vadd.f32 %v275, %v348
      %350 = vmatmul.bf16.gmra.mxu0 %v323
      %v351 = vpop.f32.mrf.mxu0
      %v352 = vadd.f32 %v278, %v351
      %v353 = vpop.f32.mrf.mxu0
      %v354 = vadd.f32 %v280, %v353
      %355 = vmatmul.bf16.gmra.mxu0 %v326
      %v356 = vpop.f32.mrf.mxu0
      %v357 = vadd.f32 %v283, %v356
      %v358 = vpop.f32.mrf.mxu0
      %v359 = vadd.f32 %v285, %v358
      %360 = vmatmul.bf16.gmra.mxu0 %v329
      %v361 = vpop.f32.mrf.mxu0
      %v362 = vadd.f32 %v288, %v361
      %v363 = vpop.f32.mrf.mxu0
      %v364 = vadd.f32 %v290, %v363
      %365 = vmatmul.bf16.gmra.mxu0 %v332
      %v366 = vpop.f32.mrf.mxu0
      %v367 = vadd.f32 %v293, %v366
      %v368 = vpop.f32.mrf.mxu0
      %369 = vdwg.mxu0
      %v370 = vld [vmem:[%s192] sm:$0xf]
      %v371 = vld [vmem:[%s192 + $0x4] sm:$0xf]
      %v372 = vld [vmem:[%s192 + $0x8] sm:$0xf]
      %v373 = vld [vmem:[%s192 + $0xc] sm:$0xf]
      %v374 = vld [vmem:[%s192 + $0x10] sm:$0xf]
      %v375 = vld [vmem:[%s192 + $0x14] sm:$0xf]
      %v376 = vld [vmem:[%s192 + $0x18] sm:$0xf]
      %v377 = vld [vmem:[%s192 + $0x1c] sm:$0xf]
      %v378 = vld [vmem:[%s192 + $0x20] sm:$0xf]
      %v379 = vld [vmem:[%s192 + $0x24] sm:$0x1]
      %s380 = scalar_lea.vmem %s1, 8
      %v381 = vld [vmem:[%s380] sm:$0xf]
      %v392 = vunpack.c.l.b16 %v370
      %v393 = vunpack.c.l.b16 %v371
      %v394 = vunpack.c.l.b16 %v372
      %v395 = vunpack.c.l.b16 %v373
      %v396 = vunpack.c.l.b16 %v374
      %v397 = vunpack.c.l.b16 %v375
      %v398 = vunpack.c.l.b16 %v376
      %v399 = vunpack.c.l.b16 %v377
      %v400 = vunpack.c.l.b16 %v378
      %v401 = vunpack.c.l.b16 %v379
      %v402 = vpack.c.b16 %v393, %v392
      %v403 = vpack.c.b16 %v395, %v394
      %v404 = vpack.c.b16 %v397, %v396
      %v405 = vpack.c.b16 %v399, %v398
      %v406 = vpack.c.b16 %v401, %v400
      %vm407 = vsmask.f32 7424
      %v409 = vshrl.u32 %v402, 16
      %v411 = vshll.u32 %v402, 16
      %v413 = vrot.slane %v411, 1
      %v414 = vor.u32 %v409, %v413
      %v416 = vshll.u32 %v403, 16
      %v418 = vrot.slane %v416, 1
      %v419 = vsel %vm407, %v414, %v418
      %v420 = vshrl.u32 %v403, 16
      %v422 = vor.u32 %v420, %v418
      %v424 = vshll.u32 %v404, 16
      %v426 = vrot.slane %v424, 1
      %v427 = vsel %vm407, %v422, %v426
      %v428 = vshrl.u32 %v404, 16
      %v430 = vor.u32 %v428, %v426
      %v432 = vshll.u32 %v405, 16
      %v434 = vrot.slane %v432, 1
      %v435 = vsel %vm407, %v430, %v434
      %v436 = vshrl.u32 %v405, 16
      %v438 = vor.u32 %v436, %v434
      %v440 = vshll.u32 %v406, 16
      %v442 = vrot.slane %v440, 1
      %v443 = vsel %vm407, %v438, %v442
      %v444 = vshrl.u32 %v406, 16
      %v446 = vor.u32 %v444, %v442
      %v448 = vsel %vm243, %v419, 0
      %v451 = vsel %vm243, %v427, 0
      %v454 = vsel %vm243, %v435, 0
      %v457 = vsel %vm243, %v443, 0
      %v460 = vsel %vm243, %v446, 0
      %v463 = vsel %vm259, %v381, 0
      %465 = vmatpush.bf16.msra.mxu0 0
      %466 = vmatpush.bf16.msra.mxu0 0
      %467 = vmatpush.bf16.msra.mxu0 0
      %468 = vmatpush.bf16.msra.mxu0 0
      %469 = vmatpush.bf16.msra.mxu0 0
      %470 = vmatpush.bf16.msra.mxu0 0
      %471 = vmatpush.bf16.msra.mxu0 0
      %472 = vmatpush.bf16.msra.mxu0 %v463
      %473 = vmatmul.bf16.gmra.mxu0 %v448
      %v474 = vpop.f32.mrf.mxu0
      %v475 = vadd.f32 0.0, %v474
      %v476 = vpop.f32.mrf.mxu0
      %v477 = vadd.f32 0.0, %v476
      %478 = vmatmul.bf16.gmra.mxu0 %v451
      %v479 = vpop.f32.mrf.mxu0
      %v480 = vadd.f32 0.0, %v479
      %v481 = vpop.f32.mrf.mxu0
      %v482 = vadd.f32 0.0, %v481
      %483 = vmatmul.bf16.gmra.mxu0 %v454
      %v484 = vpop.f32.mrf.mxu0
      %v485 = vadd.f32 0.0, %v484
      %v486 = vpop.f32.mrf.mxu0
      %v487 = vadd.f32 0.0, %v486
      %488 = vmatmul.bf16.gmra.mxu0 %v457
      %v489 = vpop.f32.mrf.mxu0
      %v490 = vadd.f32 0.0, %v489
      %v491 = vpop.f32.mrf.mxu0
      %v492 = vadd.f32 0.0, %v491
      %493 = vmatmul.bf16.gmra.mxu0 %v460
      %v494 = vpop.f32.mrf.mxu0
      %v495 = vadd.f32 0.0, %v494
      %v496 = vpop.f32.mrf.mxu0
      %497 = vdwg.mxu0
      %v498 = vadd.f32 %v347, %v475
      %v499 = vadd.f32 %v349, %v477
      %v500 = vadd.f32 %v352, %v480
      %v501 = vadd.f32 %v354, %v482
      %v502 = vadd.f32 %v357, %v485
      %v503 = vadd.f32 %v359, %v487
      %v504 = vadd.f32 %v362, %v490
      %v505 = vadd.f32 %v364, %v492
      %v506 = vadd.f32 %v367, %v495
      %v507 = vld [vmem:[%s192 + $0x58] sm:$0xf]
      %v508 = vld [vmem:[%s192 + $0x5c] sm:$0xf]
      %v509 = vld [vmem:[%s192 + $0x60] sm:$0xf]
      %v510 = vld [vmem:[%s192 + $0x64] sm:$0xf]
      %v511 = vld [vmem:[%s192 + $0x68] sm:$0xf]
      %v512 = vld [vmem:[%s192 + $0x6c] sm:$0xf]
      %v513 = vld [vmem:[%s192 + $0x70] sm:$0xf]
      %v514 = vld [vmem:[%s192 + $0x74] sm:$0xf]
      %v515 = vld [vmem:[%s192 + $0x78] sm:$0xf]
      %s516 = scalar_lea.vmem %s1, 12
      %v517 = vld [vmem:[%s516] sm:$0xf]
      %v527 = vunpack.c.l.b16 %v507
      %v528 = vunpack.c.l.b16 %v508
      %v529 = vunpack.c.l.b16 %v509
      %v530 = vunpack.c.l.b16 %v510
      %v531 = vunpack.c.l.b16 %v511
      %v532 = vunpack.c.l.b16 %v512
      %v533 = vunpack.c.l.b16 %v513
      %v534 = vunpack.c.l.b16 %v514
      %v535 = vunpack.c.l.b16 %v515
      %v536 = vpack.c.b16 %v528, %v527
      %v537 = vpack.c.b16 %v530, %v529
      %v538 = vpack.c.b16 %v532, %v531
      %v539 = vpack.c.b16 %v534, %v533
      %v540 = vpack.c.b16 %v535, %v535
      %v542 = vsel %vm243, %v536, 0
      %v545 = vsel %vm243, %v537, 0
      %v548 = vsel %vm243, %v538, 0
      %v551 = vsel %vm243, %v539, 0
      %v554 = vsel %vm243, %v540, 0
      %v557 = vsel %vm259, %v517, 0
      %559 = vmatpush.bf16.msra.mxu0 0
      %560 = vmatpush.bf16.msra.mxu0 0
      %561 = vmatpush.bf16.msra.mxu0 0
      %562 = vmatpush.bf16.msra.mxu0 0
      %563 = vmatpush.bf16.msra.mxu0 0
      %564 = vmatpush.bf16.msra.mxu0 0
      %565 = vmatpush.bf16.msra.mxu0 0
      %566 = vmatpush.bf16.msra.mxu0 %v557
      %567 = vmatmul.bf16.gmra.mxu0 %v542
      %v568 = vpop.f32.mrf.mxu0
      %v569 = vadd.f32 0.0, %v568
      %v570 = vpop.f32.mrf.mxu0
      %v571 = vadd.f32 0.0, %v570
      %572 = vmatmul.bf16.gmra.mxu0 %v545
      %v573 = vpop.f32.mrf.mxu0
      %v574 = vadd.f32 0.0, %v573
      %v575 = vpop.f32.mrf.mxu0
      %v576 = vadd.f32 0.0, %v575
      %577 = vmatmul.bf16.gmra.mxu0 %v548
      %v578 = vpop.f32.mrf.mxu0
      %v579 = vadd.f32 0.0, %v578
      %v580 = vpop.f32.mrf.mxu0
      %v581 = vadd.f32 0.0, %v580
      %582 = vmatmul.bf16.gmra.mxu0 %v551
      %v583 = vpop.f32.mrf.mxu0
      %v584 = vadd.f32 0.0, %v583
      %v585 = vpop.f32.mrf.mxu0
      %v586 = vadd.f32 0.0, %v585
      %587 = vmatmul.bf16.gmra.mxu0 %v554
      %v588 = vpop.f32.mrf.mxu0
      %v589 = vadd.f32 0.0, %v588
      %v590 = vpop.f32.mrf.mxu0
      %591 = vdwg.mxu0
      %v592 = vadd.f32 %v498, %v569
      %v593 = vadd.f32 %v499, %v571
      %v594 = vadd.f32 %v500, %v574
      %v595 = vadd.f32 %v501, %v576
      %v596 = vadd.f32 %v502, %v579
      %v597 = vadd.f32 %v503, %v581
      %v598 = vadd.f32 %v504, %v584
      %v599 = vadd.f32 %v505, %v586
      %v600 = vadd.f32 %v506, %v589
      %v601 = vld [vmem:[%s192 + $0x84] sm:$0xf]
      %v602 = vld [vmem:[%s192 + $0x88] sm:$0xf]
      %v603 = vld [vmem:[%s192 + $0x8c] sm:$0xf]
      %v604 = vld [vmem:[%s192 + $0x90] sm:$0xf]
      %v605 = vld [vmem:[%s192 + $0x94] sm:$0xf]
      %v606 = vld [vmem:[%s192 + $0x98] sm:$0xf]
      %v607 = vld [vmem:[%s192 + $0x9c] sm:$0xf]
      %v608 = vld [vmem:[%s192 + $0xa0] sm:$0xf]
      %v609 = vld [vmem:[%s192 + $0xa4] sm:$0xf]
      %s610 = scalar_lea.vmem %s1, 16
      %v611 = vld [vmem:[%s610] sm:$0xf]
      %v621 = vunpack.c.l.b16 %v601
      %v622 = vunpack.c.l.b16 %v602
      %v623 = vunpack.c.l.b16 %v603
      %v624 = vunpack.c.l.b16 %v604
      %v625 = vunpack.c.l.b16 %v605
      %v626 = vunpack.c.l.b16 %v606
      %v627 = vunpack.c.l.b16 %v607
      %v628 = vunpack.c.l.b16 %v608
      %v629 = vunpack.c.l.b16 %v609
      %v630 = vpack.c.b16 %v622, %v621
      %v631 = vpack.c.b16 %v624, %v623
      %v632 = vpack.c.b16 %v626, %v625
      %v633 = vpack.c.b16 %v628, %v627
      %v634 = vpack.c.b16 %v629, %v629
      %v636 = vsel %vm243, %v630, 0
      %v639 = vsel %vm243, %v631, 0
      %v642 = vsel %vm243, %v632, 0
      %v645 = vsel %vm243, %v633, 0
      %v648 = vsel %vm243, %v634, 0
      %v651 = vsel %vm259, %v611, 0
      %653 = vmatpush.bf16.msra.mxu0 0
      %654 = vmatpush.bf16.msra.mxu0 0
      %655 = vmatpush.bf16.msra.mxu0 0
      %656 = vmatpush.bf16.msra.mxu0 0
      %657 = vmatpush.bf16.msra.mxu0 0
      %658 = vmatpush.bf16.msra.mxu0 0
      %659 = vmatpush.bf16.msra.mxu0 0
      %660 = vmatpush.bf16.msra.mxu0 %v651
      %661 = vmatmul.bf16.gmra.mxu0 %v636
      %v662 = vpop.f32.mrf.mxu0
      %v663 = vadd.f32 0.0, %v662
      %v664 = vpop.f32.mrf.mxu0
      %v665 = vadd.f32 0.0, %v664
      %666 = vmatmul.bf16.gmra.mxu0 %v639
      %v667 = vpop.f32.mrf.mxu0
      %v668 = vadd.f32 0.0, %v667
      %v669 = vpop.f32.mrf.mxu0
      %v670 = vadd.f32 0.0, %v669
      %671 = vmatmul.bf16.gmra.mxu0 %v642
      %v672 = vpop.f32.mrf.mxu0
      %v673 = vadd.f32 0.0, %v672
      %v674 = vpop.f32.mrf.mxu0
      %v675 = vadd.f32 0.0, %v674
      %676 = vmatmul.bf16.gmra.mxu0 %v645
      %v677 = vpop.f32.mrf.mxu0
      %v678 = vadd.f32 0.0, %v677
      %v679 = vpop.f32.mrf.mxu0
      %v680 = vadd.f32 0.0, %v679
      %681 = vmatmul.bf16.gmra.mxu0 %v648
      %v682 = vpop.f32.mrf.mxu0
      %v683 = vadd.f32 0.0, %v682
      %v684 = vpop.f32.mrf.mxu0
      %685 = vdwg.mxu0
      %v686 = vadd.f32 %v592, %v663
      %v687 = vadd.f32 %v593, %v665
      %v688 = vadd.f32 %v594, %v668
      %v689 = vadd.f32 %v595, %v670
      %v690 = vadd.f32 %v596, %v673
      %v691 = vadd.f32 %v597, %v675
      %v692 = vadd.f32 %v598, %v678
      %v693 = vadd.f32 %v599, %v680
      %v694 = vadd.f32 %v600, %v683
      %v695 = vld [vmem:[%s192 + $0x58] sm:$0xf]
      %v696 = vld [vmem:[%s192 + $0x5c] sm:$0xf]
      %v697 = vld [vmem:[%s192 + $0x60] sm:$0xf]
      %v698 = vld [vmem:[%s192 + $0x64] sm:$0xf]
      %v699 = vld [vmem:[%s192 + $0x68] sm:$0xf]
      %v700 = vld [vmem:[%s192 + $0x6c] sm:$0xf]
      %v701 = vld [vmem:[%s192 + $0x70] sm:$0xf]
      %v702 = vld [vmem:[%s192 + $0x74] sm:$0xf]
      %v703 = vld [vmem:[%s192 + $0x78] sm:$0xf]
      %v704 = vld [vmem:[%s192 + $0x7c] sm:$0x1]
      %s705 = scalar_lea.vmem %s1, 20
      %v706 = vld [vmem:[%s705] sm:$0xf]
      %v717 = vunpack.c.l.b16 %v695
      %v718 = vunpack.c.l.b16 %v696
      %v719 = vunpack.c.l.b16 %v697
      %v720 = vunpack.c.l.b16 %v698
      %v721 = vunpack.c.l.b16 %v699
      %v722 = vunpack.c.l.b16 %v700
      %v723 = vunpack.c.l.b16 %v701
      %v724 = vunpack.c.l.b16 %v702
      %v725 = vunpack.c.l.b16 %v703
      %v726 = vunpack.c.l.b16 %v704
      %v727 = vpack.c.b16 %v718, %v717
      %v728 = vpack.c.b16 %v720, %v719
      %v729 = vpack.c.b16 %v722, %v721
      %v730 = vpack.c.b16 %v724, %v723
      %v731 = vpack.c.b16 %v726, %v725
      %v733 = vshrl.u32 %v727, 16
      %v735 = vshll.u32 %v727, 16
      %v737 = vrot.slane %v735, 1
      %v738 = vor.u32 %v733, %v737
      %v740 = vshll.u32 %v728, 16
      %v742 = vrot.slane %v740, 1
      %v743 = vsel %vm407, %v738, %v742
      %v744 = vshrl.u32 %v728, 16
      %v746 = vor.u32 %v744, %v742
      %v748 = vshll.u32 %v729, 16
      %v750 = vrot.slane %v748, 1
      %v751 = vsel %vm407, %v746, %v750
      %v752 = vshrl.u32 %v729, 16
      %v754 = vor.u32 %v752, %v750
      %v756 = vshll.u32 %v730, 16
      %v758 = vrot.slane %v756, 1
      %v759 = vsel %vm407, %v754, %v758
      %v760 = vshrl.u32 %v730, 16
      %v762 = vor.u32 %v760, %v758
      %v764 = vshll.u32 %v731, 16
      %v766 = vrot.slane %v764, 1
      %v767 = vsel %vm407, %v762, %v766
      %v768 = vshrl.u32 %v731, 16
      %v770 = vor.u32 %v768, %v766
      %v772 = vsel %vm243, %v743, 0
      %v775 = vsel %vm243, %v751, 0
      %v778 = vsel %vm243, %v759, 0
      %v781 = vsel %vm243, %v767, 0
      %v784 = vsel %vm243, %v770, 0
      %v787 = vsel %vm259, %v706, 0
      %789 = vmatpush.bf16.msra.mxu0 0
      %790 = vmatpush.bf16.msra.mxu0 0
      %791 = vmatpush.bf16.msra.mxu0 0
      %792 = vmatpush.bf16.msra.mxu0 0
      %793 = vmatpush.bf16.msra.mxu0 0
      %794 = vmatpush.bf16.msra.mxu0 0
      %795 = vmatpush.bf16.msra.mxu0 0
      %796 = vmatpush.bf16.msra.mxu0 %v787
      %797 = vmatmul.bf16.gmra.mxu0 %v772
      %v798 = vpop.f32.mrf.mxu0
      %v799 = vadd.f32 0.0, %v798
      %v800 = vpop.f32.mrf.mxu0
      %v801 = vadd.f32 0.0, %v800
      %802 = vmatmul.bf16.gmra.mxu0 %v775
      %v803 = vpop.f32.mrf.mxu0
      %v804 = vadd.f32 0.0, %v803
      %v805 = vpop.f32.mrf.mxu0
      %v806 = vadd.f32 0.0, %v805
      %807 = vmatmul.bf16.gmra.mxu0 %v778
      %v808 = vpop.f32.mrf.mxu0
      %v809 = vadd.f32 0.0, %v808
      %v810 = vpop.f32.mrf.mxu0
      %v811 = vadd.f32 0.0, %v810
      %812 = vmatmul.bf16.gmra.mxu0 %v781
      %v813 = vpop.f32.mrf.mxu0
      %v814 = vadd.f32 0.0, %v813
      %v815 = vpop.f32.mrf.mxu0
      %v816 = vadd.f32 0.0, %v815
      %817 = vmatmul.bf16.gmra.mxu0 %v784
      %v818 = vpop.f32.mrf.mxu0
      %v819 = vadd.f32 0.0, %v818
      %v820 = vpop.f32.mrf.mxu0
      %821 = vdwg.mxu0
      %v822 = vadd.f32 %v686, %v799
      %v823 = vadd.f32 %v687, %v801
      %v824 = vadd.f32 %v688, %v804
      %v825 = vadd.f32 %v689, %v806
      %v826 = vadd.f32 %v690, %v809
      %v827 = vadd.f32 %v691, %v811
      %v828 = vadd.f32 %v692, %v814
      %v829 = vadd.f32 %v693, %v816
      %v830 = vadd.f32 %v694, %v819
      %v831 = vld [vmem:[%s192 + $0x4] sm:$0xf]
      %v832 = vld [vmem:[%s192 + $0x8] sm:$0xf]
      %v833 = vld [vmem:[%s192 + $0xc] sm:$0xf]
      %v834 = vld [vmem:[%s192 + $0x10] sm:$0xf]
      %v835 = vld [vmem:[%s192 + $0x14] sm:$0xf]
      %v836 = vld [vmem:[%s192 + $0x18] sm:$0xf]
      %v837 = vld [vmem:[%s192 + $0x1c] sm:$0xf]
      %v838 = vld [vmem:[%s192 + $0x20] sm:$0xf]
      %v839 = vld [vmem:[%s192 + $0x24] sm:$0xf]
      %v840 = vld [vmem:[%s192 + $0x28] sm:$0x1]
      %s841 = scalar_lea.vmem %s1, 24
      %v842 = vld [vmem:[%s841] sm:$0xf]
      %v853 = vunpack.c.l.b16 %v831
      %v854 = vunpack.c.l.b16 %v832
      %v855 = vunpack.c.l.b16 %v833
      %v856 = vunpack.c.l.b16 %v834
      %v857 = vunpack.c.l.b16 %v835
      %v858 = vunpack.c.l.b16 %v836
      %v859 = vunpack.c.l.b16 %v837
      %v860 = vunpack.c.l.b16 %v838
      %v861 = vunpack.c.l.b16 %v839
      %v862 = vunpack.c.l.b16 %v840
      %v863 = vpack.c.b16 %v854, %v853
      %v864 = vpack.c.b16 %v856, %v855
      %v865 = vpack.c.b16 %v858, %v857
      %v866 = vpack.c.b16 %v860, %v859
      %v867 = vpack.c.b16 %v862, %v861
      %v869 = vshrl.u32 %v863, 16
      %v871 = vshll.u32 %v863, 16
      %v873 = vrot.slane %v871, 1
      %v874 = vor.u32 %v869, %v873
      %v876 = vshll.u32 %v864, 16
      %v878 = vrot.slane %v876, 1
      %v879 = vsel %vm407, %v874, %v878
      %v880 = vshrl.u32 %v864, 16
      %v882 = vor.u32 %v880, %v878
      %v884 = vshll.u32 %v865, 16
      %v886 = vrot.slane %v884, 1
      %v887 = vsel %vm407, %v882, %v886
      %v888 = vshrl.u32 %v865, 16
      %v890 = vor.u32 %v888, %v886
      %v892 = vshll.u32 %v866, 16
      %v894 = vrot.slane %v892, 1
      %v895 = vsel %vm407, %v890, %v894
      %v896 = vshrl.u32 %v866, 16
      %v898 = vor.u32 %v896, %v894
      %v900 = vshll.u32 %v867, 16
      %v902 = vrot.slane %v900, 1
      %v903 = vsel %vm407, %v898, %v902
      %v904 = vshrl.u32 %v867, 16
      %v906 = vor.u32 %v904, %v902
      %v908 = vsel %vm243, %v879, 0
      %v911 = vsel %vm243, %v887, 0
      %v914 = vsel %vm243, %v895, 0
      %v917 = vsel %vm243, %v903, 0
      %v920 = vsel %vm243, %v906, 0
      %v923 = vsel %vm259, %v842, 0
      %925 = vmatpush.bf16.msra.mxu0 0
      %926 = vmatpush.bf16.msra.mxu0 0
      %927 = vmatpush.bf16.msra.mxu0 0
      %928 = vmatpush.bf16.msra.mxu0 0
      %929 = vmatpush.bf16.msra.mxu0 0
      %930 = vmatpush.bf16.msra.mxu0 0
      %931 = vmatpush.bf16.msra.mxu0 0
      %932 = vmatpush.bf16.msra.mxu0 %v923
      %933 = vmatmul.bf16.gmra.mxu0 %v908
      %v934 = vpop.f32.mrf.mxu0
      %v935 = vadd.f32 0.0, %v934
      %v936 = vpop.f32.mrf.mxu0
      %v937 = vadd.f32 0.0, %v936
      %938 = vmatmul.bf16.gmra.mxu0 %v911
      %v939 = vpop.f32.mrf.mxu0
      %v940 = vadd.f32 0.0, %v939
      %v941 = vpop.f32.mrf.mxu0
      %v942 = vadd.f32 0.0, %v941
      %943 = vmatmul.bf16.gmra.mxu0 %v914
      %v944 = vpop.f32.mrf.mxu0
      %v945 = vadd.f32 0.0, %v944
      %v946 = vpop.f32.mrf.mxu0
      %v947 = vadd.f32 0.0, %v946
      %948 = vmatmul.bf16.gmra.mxu0 %v917
      %v949 = vpop.f32.mrf.mxu0
      %v950 = vadd.f32 0.0, %v949
      %v951 = vpop.f32.mrf.mxu0
      %v952 = vadd.f32 0.0, %v951
      %953 = vmatmul.bf16.gmra.mxu0 %v920
      %v954 = vpop.f32.mrf.mxu0
      %v955 = vadd.f32 0.0, %v954
      %v956 = vpop.f32.mrf.mxu0
      %957 = vdwg.mxu0
      %v958 = vadd.f32 %v822, %v935
      %v959 = vadd.f32 %v823, %v937
      %v960 = vadd.f32 %v824, %v940
      %v961 = vadd.f32 %v825, %v942
      %v962 = vadd.f32 %v826, %v945
      %v963 = vadd.f32 %v827, %v947
      %v964 = vadd.f32 %v828, %v950
      %v965 = vadd.f32 %v829, %v952
      %v966 = vadd.f32 %v830, %v955
      %v967 = vld [vmem:[%s192 + $0x30] sm:$0xf]
      %v968 = vld [vmem:[%s192 + $0x34] sm:$0xf]
      %v969 = vld [vmem:[%s192 + $0x38] sm:$0xf]
      %v970 = vld [vmem:[%s192 + $0x3c] sm:$0xf]
      %v971 = vld [vmem:[%s192 + $0x40] sm:$0xf]
      %v972 = vld [vmem:[%s192 + $0x44] sm:$0xf]
      %v973 = vld [vmem:[%s192 + $0x48] sm:$0xf]
      %v974 = vld [vmem:[%s192 + $0x4c] sm:$0xf]
      %v975 = vld [vmem:[%s192 + $0x50] sm:$0xf]
      %v976 = vld [vmem:[%s192 + $0x54] sm:$0x1]
      %s977 = scalar_lea.vmem %s1, 28
      %v978 = vld [vmem:[%s977] sm:$0xf]
      %v989 = vunpack.c.l.b16 %v967
      %v990 = vunpack.c.l.b16 %v968
      %v991 = vunpack.c.l.b16 %v969
      %v992 = vunpack.c.l.b16 %v970
      %v993 = vunpack.c.l.b16 %v971
      %v994 = vunpack.c.l.b16 %v972
      %v995 = vunpack.c.l.b16 %v973
      %v996 = vunpack.c.l.b16 %v974
      %v997 = vunpack.c.l.b16 %v975
      %v998 = vunpack.c.l.b16 %v976
      %v999 = vpack.c.b16 %v990, %v989
      %v1000 = vpack.c.b16 %v992, %v991
      %v1001 = vpack.c.b16 %v994, %v993
      %v1002 = vpack.c.b16 %v996, %v995
      %v1003 = vpack.c.b16 %v998, %v997
      %v1005 = vshrl.u32 %v999, 16
      %v1007 = vshll.u32 %v999, 16
      %v1009 = vrot.slane %v1007, 1
      %v1010 = vor.u32 %v1005, %v1009
      %v1012 = vshll.u32 %v1000, 16
      %v1014 = vrot.slane %v1012, 1
      %v1015 = vsel %vm407, %v1010, %v1014
      %v1016 = vshrl.u32 %v1000, 16
      %v1018 = vor.u32 %v1016, %v1014
      %v1020 = vshll.u32 %v1001, 16
      %v1022 = vrot.slane %v1020, 1
      %v1023 = vsel %vm407, %v1018, %v1022
      %v1024 = vshrl.u32 %v1001, 16
      %v1026 = vor.u32 %v1024, %v1022
      %v1028 = vshll.u32 %v1002, 16
      %v1030 = vrot.slane %v1028, 1
      %v1031 = vsel %vm407, %v1026, %v1030
      %v1032 = vshrl.u32 %v1002, 16
      %v1034 = vor.u32 %v1032, %v1030
      %v1036 = vshll.u32 %v1003, 16
      %v1038 = vrot.slane %v1036, 1
      %v1039 = vsel %vm407, %v1034, %v1038
      %v1040 = vshrl.u32 %v1003, 16
      %v1042 = vor.u32 %v1040, %v1038
      %v1044 = vsel %vm243, %v1015, 0
      %v1047 = vsel %vm243, %v1023, 0
      %v1050 = vsel %vm243, %v1031, 0
      %v1053 = vsel %vm243, %v1039, 0
      %v1056 = vsel %vm243, %v1042, 0
      %v1059 = vsel %vm259, %v978, 0
      %1061 = vmatpush.bf16.msra.mxu0 0
      %1062 = vmatpush.bf16.msra.mxu0 0
      %1063 = vmatpush.bf16.msra.mxu0 0
      %1064 = vmatpush.bf16.msra.mxu0 0
      %1065 = vmatpush.bf16.msra.mxu0 0
      %1066 = vmatpush.bf16.msra.mxu0 0
      %1067 = vmatpush.bf16.msra.mxu0 0
      %1068 = vmatpush.bf16.msra.mxu0 %v1059
      %1069 = vmatmul.bf16.gmra.mxu0 %v1044
      %v1070 = vpop.f32.mrf.mxu0
      %v1071 = vadd.f32 0.0, %v1070
      %v1072 = vpop.f32.mrf.mxu0
      %v1073 = vadd.f32 0.0, %v1072
      %1074 = vmatmul.bf16.gmra.mxu0 %v1047
      %v1075 = vpop.f32.mrf.mxu0
      %v1076 = vadd.f32 0.0, %v1075
      %v1077 = vpop.f32.mrf.mxu0
      %v1078 = vadd.f32 0.0, %v1077
      %1079 = vmatmul.bf16.gmra.mxu0 %v1050
      %v1080 = vpop.f32.mrf.mxu0
      %v1081 = vadd.f32 0.0, %v1080
      %v1082 = vpop.f32.mrf.mxu0
      %v1083 = vadd.f32 0.0, %v1082
      %1084 = vmatmul.bf16.gmra.mxu0 %v1053
      %v1085 = vpop.f32.mrf.mxu0
      %v1086 = vadd.f32 0.0, %v1085
      %v1087 = vpop.f32.mrf.mxu0
      %v1088 = vadd.f32 0.0, %v1087
      %1089 = vmatmul.bf16.gmra.mxu0 %v1056
      %v1090 = vpop.f32.mrf.mxu0
      %v1091 = vadd.f32 0.0, %v1090
      %v1092 = vpop.f32.mrf.mxu0
      %1093 = vdwg.mxu0
      %v1094 = vadd.f32 %v958, %v1071
      %v1095 = vadd.f32 %v959, %v1073
      %v1096 = vadd.f32 %v960, %v1076
      %v1097 = vadd.f32 %v961, %v1078
      %v1098 = vadd.f32 %v962, %v1081
      %v1099 = vadd.f32 %v963, %v1083
      %v1100 = vadd.f32 %v964, %v1086
      %v1101 = vadd.f32 %v965, %v1088
      %v1102 = vadd.f32 %v966, %v1091
      %v1103 = vld [vmem:[%s192 + $0x4] sm:$0xe]
      %s1104 = scalar_lea.vmem %s1, 32
      %v1105 = vld [vmem:[%s1104] sm:$0xf]
      %v1107 = vunpack.c.l.b16 %v1103
      %v1108 = vpack.c.b16 %v854, %v1107
      %vm1109 = vcmask 1046528
      %v1110 = vrot.slane %v1108, 1
      %v1111 = vrot.slane %v864, 1
      %v1112 = vsel %vm1109, %v1110, %v1111
      %v1113 = vrot.slane %v865, 1
      %v1114 = vsel %vm1109, %v1111, %v1113
      %v1115 = vrot.slane %v866, 1
      %v1116 = vsel %vm1109, %v1113, %v1115
      %v1117 = vrot.slane %v867, 1
      %v1118 = vsel %vm1109, %v1115, %v1117
      %v1120 = vsel %vm243, %v1112, 0
      %v1123 = vsel %vm243, %v1114, 0
      %v1126 = vsel %vm243, %v1116, 0
      %v1129 = vsel %vm243, %v1118, 0
      %v1132 = vsel %vm243, %v1117, 0
      %v1135 = vsel %vm259, %v1105, 0
      %1137 = vmatpush.bf16.msra.mxu0 0
      %1138 = vmatpush.bf16.msra.mxu0 0
      %1139 = vmatpush.bf16.msra.mxu0 0
      %1140 = vmatpush.bf16.msra.mxu0 0
      %1141 = vmatpush.bf16.msra.mxu0 0
      %1142 = vmatpush.bf16.msra.mxu0 0
      %1143 = vmatpush.bf16.msra.mxu0 0
      %1144 = vmatpush.bf16.msra.mxu0 %v1135
      %1145 = vmatmul.bf16.gmra.mxu0 %v1120
      %v1146 = vpop.f32.mrf.mxu0
      %v1147 = vadd.f32 0.0, %v1146
      %v1148 = vpop.f32.mrf.mxu0
      %v1149 = vadd.f32 0.0, %v1148
      %1150 = vmatmul.bf16.gmra.mxu0 %v1123
      %v1151 = vpop.f32.mrf.mxu0
      %v1152 = vadd.f32 0.0, %v1151
      %v1153 = vpop.f32.mrf.mxu0
      %v1154 = vadd.f32 0.0, %v1153
      %1155 = vmatmul.bf16.gmra.mxu0 %v1126
      %v1156 = vpop.f32.mrf.mxu0
      %v1157 = vadd.f32 0.0, %v1156
      %v1158 = vpop.f32.mrf.mxu0
      %v1159 = vadd.f32 0.0, %v1158
      %1160 = vmatmul.bf16.gmra.mxu0 %v1129
      %v1161 = vpop.f32.mrf.mxu0
      %v1162 = vadd.f32 0.0, %v1161
      %v1163 = vpop.f32.mrf.mxu0
      %v1164 = vadd.f32 0.0, %v1163
      %1165 = vmatmul.bf16.gmra.mxu0 %v1132
      %v1166 = vpop.f32.mrf.mxu0
      %v1167 = vadd.f32 0.0, %v1166
      %v1168 = vpop.f32.mrf.mxu0
      %1169 = vdwg.mxu0
      %v1170 = vadd.f32 %v1094, %v1147
      %v1171 = vadd.f32 %v1095, %v1149
      %v1172 = vadd.f32 %v1096, %v1152
      %v1173 = vadd.f32 %v1097, %v1154
      %v1174 = vadd.f32 %v1098, %v1157
      %v1175 = vadd.f32 %v1099, %v1159
      %v1176 = vadd.f32 %v1100, %v1162
      %v1177 = vadd.f32 %v1101, %v1164
      %v1178 = vadd.f32 %v1102, %v1167
      %v1179 = vlaneseq
      %v1180 = vand.u32 %v1179, 127
      %vm1181 = vcmp.lt.s32.totalorder %v1180, 0
      %v1182 = vsub.s32 0, %v1180
      %v1183 = vsel %vm1181, %v1182, %v1180
      %v1184 = vand.u32 %v1183, 65535
      %v1185 = vshrl.u32 %v1183, 16
      %v1187 = vmul.u32 %v1184, 14564
      %v1188 = vmul.u32 %v1184, 58254
      %v1189 = vmul.u32 %v1185, 14564
      %v1190 = vmul.u32 %v1185, 58254
      %v1191 = vshll.u32 %v1188, 16
      %v1192 = vshrl.u32 %v1188, 16
      %v1193 = vshll.u32 %v1189, 16
      %v1194 = vshrl.u32 %v1189, 16
      %vm1195 = vc.u32 %v1187, %v1191
      %v1196 = vsel %vm1195, 1, 0
      %v1197 = vadd.s32 %v1187, %v1191
      %v1198 = vadd.s32 %v1190, %v1196
      %vm1199 = vc.u32 %v1197, %v1193
      %v1200 = vsel %vm1199, 1, 0
      %v1201 = vadd.s32 %v1197, %v1193
      %v1202 = vadd.s32 %v1198, %v1200
      %v1203 = vadd.s32 %v1202, %v1192
      %v1204 = vadd.s32 %v1203, %v1194
      %v1205 = vshrl.u32 %v1204, 3
      %v1206 = vmul.u32 %v1205, 9
      %v1207 = vsub.s32 %v1183, %v1206
      %v1208 = vsub.s32 0, %v1207
      %v1209 = vsel %vm1181, %v1208, %v1207
      %vm1210 = vcmp.ne.s32.totalorder %v1209, 0
      %vm1211 = vcmp.lt.s32.totalorder %v1209, 0
      %vm1212 = vmand %vm1211, %vm1210
      %v1213 = vadd.s32 %v1209, 9
      %v1214 = vsel %vm1212, %v1213, %v1209
      %vm1215 = vcmp.lt.s32.totalorder %v1214, 8
      %v1216 = vsel %vm1215, 1, 0
      %v1217 = vcvt.s32.f32 %v1216
      %vm1218 = vcmask 588800
      %v1220 = vsel %vm1218, %v1217, 0
      %1222 = vmatpush.msra.mxu0 0.0
      %1223 = vmatpush.msra.mxu0 0.0
      %1224 = vmatpush.msra.mxu0 0.0
      %1225 = vmatpush.msra.mxu0 0.0
      %1226 = vmatpush.msra.mxu0 0.0
      %1227 = vmatpush.msra.mxu0 0.0
      %1228 = vmatpush.msra.mxu0 0.0
      %1229 = vmatpush.msra.mxu0 %v1178
      %1230 = vmatpush.msra.mxu0 %v1177
      %1231 = vmatpush.msra.mxu0 %v1176
      %1232 = vmatpush.msra.mxu0 %v1175
      %1233 = vmatpush.msra.mxu0 %v1174
      %1234 = vmatpush.msra.mxu0 %v1173
      %1235 = vmatpush.msra.mxu0 %v1172
      %1236 = vmatpush.msra.mxu0 %v1171
      %1237 = vmatpush.msra.mxu0 %v1170
      %1238 = vmatmul.f32.gmra.mxu0 %v1220
      %v1239 = vpop.f32.mrf.mxu0
      %v1240 = vadd.f32 0.0, %v1239
      %1241 = vdwg.mxu0
      %v1242 = vmul.f32 %v1240, 0.015625
      %v1243 = vmul.f32 %v1170, %v1170
      %v1244 = vmul.f32 %v1171, %v1171
      %v1245 = vmul.f32 %v1172, %v1172
      %v1246 = vmul.f32 %v1173, %v1173
      %v1247 = vmul.f32 %v1174, %v1174
      %v1248 = vmul.f32 %v1175, %v1175
      %v1249 = vmul.f32 %v1176, %v1176
      %v1250 = vmul.f32 %v1177, %v1177
      %v1251 = vmul.f32 %v1178, %v1178
      %1252 = vmatpush.msra.mxu0 0.0
      %1253 = vmatpush.msra.mxu0 0.0
      %1254 = vmatpush.msra.mxu0 0.0
      %1255 = vmatpush.msra.mxu0 0.0
      %1256 = vmatpush.msra.mxu0 0.0
      %1257 = vmatpush.msra.mxu0 0.0
      %1258 = vmatpush.msra.mxu0 0.0
      %1259 = vmatpush.msra.mxu0 %v1251
      %1260 = vmatpush.msra.mxu0 %v1250
      %1261 = vmatpush.msra.mxu0 %v1249
      %1262 = vmatpush.msra.mxu0 %v1248
      %1263 = vmatpush.msra.mxu0 %v1247
      %1264 = vmatpush.msra.mxu0 %v1246
      %1265 = vmatpush.msra.mxu0 %v1245
      %1266 = vmatpush.msra.mxu0 %v1244
      %1267 = vmatpush.msra.mxu0 %v1243
      %1268 = vmatmul.f32.gmra.mxu0 %v1220
      %v1269 = vpop.f32.mrf.mxu0
      %v1270 = vadd.f32 0.0, %v1269
      %1271 = vdwg.mxu0
      %v1272 = vmul.f32 %v1270, 0.015625
      %v1273 = vmul.f32 %v1242, %v1242
      %v1274 = vsub.f32 %v1272, %v1273
      %v1275 = vmax.f32 %v1274, 0.0
      %v1276 = vld [vmem:[%s2] sm:$0x1]
      %v1277 = vadd.f32 %v1275, 1e-05
      %v1278 = vrsqrt.pop %v1277
      %v1279 = vmul.f32 %v1278, %v1277
      %v1280 = vmul.f32 %v1279, %v1278
      %v1281 = vmul.f32 0.5, %v1280
      %v1282 = vsub.f32 1.5, %v1281
      %v1283 = vmul.f32 %v1278, %v1282
      %vm1284 = vweird.f32 %v1277
      %vm1285 = vweird.f32 %v1278
      %vm1286 = vmor %vm1284, %vm1285
      %v1287 = vsel %vm1286, %v1278, %v1283
      %v1288 = vmul.f32 %v1276, %v1287
      %v1289 = vld [vmem:[%s3] sm:$0x1]
      %v1290 = vmul.f32 %v1242, %v1288
      %v1291 = vsub.f32 %v1289, %v1290
      %v1293 = vperm.slane %v1288, 0
      %v1295 = vmul.f32 %v1170, %v1293
      %v1296 = vmul.f32 %v1171, %v1293
      %v1297 = vmul.f32 %v1172, %v1293
      %v1298 = vmul.f32 %v1173, %v1293
      %v1299 = vmul.f32 %v1174, %v1293
      %v1300 = vmul.f32 %v1175, %v1293
      %v1301 = vmul.f32 %v1176, %v1293
      %v1302 = vmul.f32 %v1177, %v1293
      %v1303 = vmul.f32 %v1178, %v1293
      %v1305 = vperm.slane %v1291, 0
      %v1307 = vadd.f32 %v1295, %v1305
      %v1308 = vadd.f32 %v1296, %v1305
      %v1309 = vadd.f32 %v1297, %v1305
      %v1310 = vadd.f32 %v1298, %v1305
      %v1311 = vadd.f32 %v1299, %v1305
      %v1312 = vadd.f32 %v1300, %v1305
      %v1313 = vadd.f32 %v1301, %v1305
      %v1314 = vadd.f32 %v1302, %v1305
      %v1315 = vadd.f32 %v1303, %v1305
      %v1316 = vmax.f32 %v1307, 0.0
      %v1317 = vmax.f32 %v1308, 0.0
      %v1318 = vmax.f32 %v1309, 0.0
      %v1319 = vmax.f32 %v1310, 0.0
      %v1320 = vmax.f32 %v1311, 0.0
      %v1321 = vmax.f32 %v1312, 0.0
      %v1322 = vmax.f32 %v1313, 0.0
      %v1323 = vmax.f32 %v1314, 0.0
      %v1324 = vmax.f32 %v1315, 0.0
      %v1325 = vpack.c.bf16 %v1316, %v1316
      %v1326 = vpack.c.bf16 %v1317, %v1317
      %v1327 = vpack.c.bf16 %v1318, %v1318
      %v1328 = vpack.c.bf16 %v1319, %v1319
      %v1329 = vpack.c.bf16 %v1320, %v1320
      %v1330 = vpack.c.bf16 %v1321, %v1321
      %v1331 = vpack.c.bf16 %v1322, %v1322
      %v1332 = vpack.c.bf16 %v1323, %v1323
      %v1333 = vpack.c.bf16 %v1324, %v1324
      %1334 = vst [vmem:[%s197] sm:$0xf] %v1325
      %1335 = vst [vmem:[%s197 + $0x4] sm:$0xf] %v1326
      %1336 = vst [vmem:[%s197 + $0x8] sm:$0xf] %v1327
      %1337 = vst [vmem:[%s197 + $0xc] sm:$0xf] %v1328
      %1338 = vst [vmem:[%s197 + $0x10] sm:$0xf] %v1329
      %1339 = vst [vmem:[%s197 + $0x14] sm:$0xf] %v1330
      %1340 = vst [vmem:[%s197 + $0x18] sm:$0xf] %v1331
      %1341 = vst [vmem:[%s197 + $0x1c] sm:$0xf] %v1332
      %1342 = vst [vmem:[%s197 + $0x20] sm:$0xf] %v1333
      %p1343 = scmp.lt.s32.totalorder %s15, 1
      %s1344 = scalar_select %p1343, %s15, 1
      %s1345 = smul.addr %s1344, 9
      %s1346 = smul.addr %s1345, 4
      %s1347 = scalar_lea.vmem %s4, %s1346
      // Predicated region
      $region37: #{forward.3} parent=35 // pred_check
        %p1348 = pneg %p122
      $region38: #{forward.3} parent=35 // pred_check_branch
        %1350 = sbr.rel (%p1348) target = $region40
      $region39: #{forward.3} parent=35 // pred_region
        _
      $region40: #{forward.3} parent=35 // pred_fallthru
        _
    $region36: #{forward.3} parent=5 // pred_fallthru
      _
    %p1351 = scmp.le.s32.totalorder 2, %s10
    // Predicated region
    $region41: #{forward.3} parent=5 // pred_check
      %p1352 = pneg %p1351
    $region42: #{forward.3} parent=5 // pred_check_branch
      %1354 = sbr.rel (%p1352) target = $region44
    $region43: #{forward.3} parent=5 // pred_region
      %s1355 = ssub.s32 %s10, 2
      // Predicated region
      $region45: #{forward.3} parent=43 // pred_check
        %p1356 = pneg %p128
      $region46: #{forward.3} parent=43 // pred_check_branch
        %1358 = sbr.rel (%p1356) target = $region48
      $region47: #{forward.3} parent=43 // pred_region
        %p1359 = scmp.lt.s32.totalorder %s16, 1
        %s1360 = scalar_select %p1359, %s16, 1
        %s1361 = smul.addr %s1360, 9
        %s1362 = smul.addr %s1361, 4
        %s1363 = scalar_lea.vmem %s4, %s1362
      $region48: #{forward.3} parent=43 // pred_fallthru
        _
    $region44: #{forward.3} parent=5 // pred_fallthru
      _
  $region6: #{forward.3} parent=0 // loop_footer
    %s14 = sadd.s32 1, %s10
  $region7: #{forward.3} parent=0 // loop_footer_branch
    %9 = sbr.rel target = $region3
  $region8: #{forward.3} parent=0 // loop_exit
    _

</llo_original>
